<compile_context>
chip_gen: v7x
topology: tpu7x:2x2x1
jax: 0.10.0
libtpu: 0.0.40
codegen_flags: <defaults>
</compile_context>

<pallas_src>
import math
from functools import partial

import jax
import jax.numpy as jnp
import numpy as np
from jax import lax
from jax.experimental import pallas as pl
from jax.experimental.pallas import tpu as pltpu


def _cross_attn_kernel(xq_ref, xkv_ref, wq_ref, wk_ref, wv_ref, wo_ref,
                       o_ref, k_sc, v_sc, *, n_heads, head_dim):
    """One (batch, q-tile) grid step.

    xq_ref : (1, TQ,  F)  bf16   query-activation tile
    xkv_ref: (1, Nkv, F)  bf16   whole KV sequence of this batch element
    wq/wk/wv_ref: (F, H*D) bf16  lane-dense projections (1/sqrt(D) folded into Wq)
    wo_ref : (H*D, F)     bf16
    o_ref  : (1, TQ, F)
    k_sc/v_sc: (Nkv, H*D) bf16   per-batch projected K / V cache (VMEM scratch)
    """
    # ---- Per-batch K/V projection cache: fill only on the first q-tile. --------
    @pl.when(pl.program_id(1) == 0)
    def _():
        xkv = xkv_ref[0]                                              # (Nkv, F)
        # K then V sequentially: only one (Nkv, H*D) f32 temporary is live at a time.
        k_sc[...] = jnp.dot(xkv, wk_ref[...],
                            preferred_element_type=jnp.float32).astype(k_sc.dtype)
        v_sc[...] = jnp.dot(xkv, wv_ref[...],
                            preferred_element_type=jnp.float32).astype(v_sc.dtype)

    # ---- Q projection for this tile (one lane-dense MXU matmul). ----------------
    xq = xq_ref[0]                                                    # (TQ, F)
    q = jnp.dot(xq, wq_ref[...],
                preferred_element_type=jnp.float32).astype(jnp.bfloat16)  # (TQ, H*D)

    tq = q.shape[0]
    n_feats = wo_ref.shape[1]

    # ---- Per-head attention with the output projection fused per head. ----------
    # No (TQ, H*D) context is materialized and no sub-128-lane stores are issued:
    # the only store of this step is the single lane-dense (TQ, F) o_ref write.
    o_acc = jnp.zeros((tq, n_feats), jnp.float32)
    for h in range(n_heads):
        lo = h * head_dim
        hi = lo + head_dim
        qh = q[:, lo:hi]                                              # (TQ,  D)
        kh = k_sc[:, lo:hi]                                           # (Nkv, D)
        vh = v_sc[:, lo:hi]                                           # (Nkv, D)

        # Contract the last dims directly -> no materialized k.T.
        s = lax.dot_general(qh, kh, (((1,), (1,)), ((), ())),
                            preferred_element_type=jnp.float32)       # (TQ, Nkv) f32
        s = s - jnp.max(s, axis=-1, keepdims=True)
        p = jnp.exp(s)
        p = p * pl.reciprocal(jnp.sum(p, axis=-1, keepdims=True), approx=False)

        oh = jnp.dot(p.astype(jnp.bfloat16), vh,
                     preferred_element_type=jnp.float32)              # (TQ, D) f32
        # Fold this head straight into the output projection.
        o_acc = o_acc + jnp.dot(oh.astype(jnp.bfloat16), wo_ref[lo:hi, :],
                                preferred_element_type=jnp.float32)   # (TQ, F) f32

    o_ref[0] = o_acc.astype(o_ref.dtype)


def _tpu_vmem_capacity_bytes():
    """Physical VMEM per TensorCore, with a conservative (v7x-sized) fallback."""
    cap = 64 * 1024 * 1024
    try:
        info = pltpu.get_tpu_info()
        cap = int(getattr(info, "vmem_capacity_bytes", cap) or cap)
    except Exception:
        pass
    return cap


def cross_attention_pallas(xq, xkv, wq_fd, wk_fd, wv_fd, wo_df,
                           n_heads, head_dim, tq=None, out_dtype=None):
    """xq: (B,Nq,F), xkv: (B,Nkv,F); weights lane-dense (F,H*D)/(H*D,F), bf16."""
    B, Nq, F = xq.shape
    _, Nkv, _ = xkv.shape
    HD = n_heads * head_dim
    if out_dtype is None:
        # Pass jnp.bfloat16 here to halve output writeback if downstream accepts it.
        out_dtype = xq.dtype

    # ---- Generation-aware tiling / VMEM budget. ---------------------------------
    vmem_cap = _tpu_vmem_capacity_bytes()
    # Never set the scoped limit at the physical cap; leave headroom for compiler scratch.
    vmem_limit = min(int(vmem_cap * 0.85), 112 * 1024 * 1024)
    if tq is None:
        # 128 MiB parts (v5e/v6e): bigger query tiles feed the MXU better; v7x keeps 256.
        max_tq = 512 if vmem_cap >= 100 * 1024 * 1024 else 256
        tq = Nq if Nq <= max_tq else max_tq
    assert Nq % tq == 0, "Nq must be divisible by the query tile"  # TODO(synk): ragged Nq

    # Activations to bf16 (MXU-native); weights are already bf16 from prep time.
    xq_b = xq.astype(jnp.bfloat16)
    xkv_b = xkv.astype(jnp.bfloat16)

    kernel = partial(_cross_attn_kernel, n_heads=n_heads, head_dim=head_dim)

    # K/V projection now really is once per batch element, matching this count.
    flops = 2 * B * (Nq * F * HD          # Q proj
                     + 2 * Nkv * F * HD   # K,V proj (once per batch element)
                     + 2 * Nq * Nkv * HD  # scores + p@v
                     + Nq * HD * F)       # out proj
    weight_bytes = (wq_fd.size + wk_fd.size + wv_fd.size + wo_df.size) * 2
    bytes_accessed = ((xq_b.size + xkv_b.size) * 2 + weight_bytes
                      + B * Nq * F * np.dtype(out_dtype).itemsize)
    cost = pl.CostEstimate(flops=flops,
                           transcendentals=B * n_heads * Nq * Nkv,
                           bytes_accessed=bytes_accessed)

    def build(single_buffer_consts):
        # Constant-index (VMEM-resident) weights never need double buffering.
        const_kw = dict(pipeline_mode=pl.Buffered(1)) if single_buffer_consts else {}
        in_specs = [
            # q tile: index changes every step -> keep default double buffering.
            pl.BlockSpec((1, tq, F), lambda b, i: (b, i, 0)),
            # whole KV sequence: index constant in i -> DMA'd once per batch element.
            pl.BlockSpec((1, Nkv, F), lambda b, i: (b, 0, 0)),
            pl.BlockSpec((F, HD), lambda b, i: (0, 0), **const_kw),   # Wq (scale folded)
            pl.BlockSpec((F, HD), lambda b, i: (0, 0), **const_kw),   # Wk
            pl.BlockSpec((F, HD), lambda b, i: (0, 0), **const_kw),   # Wv
            pl.BlockSpec((HD, F), lambda b, i: (0, 0), **const_kw),   # Wo
        ]
        return pl.pallas_call(
            kernel,
            out_shape=jax.ShapeDtypeStruct((B, Nq, F), out_dtype),
            grid_spec=pltpu.PrefetchScalarGridSpec(
                num_scalar_prefetch=0,
                grid=(B, Nq // tq),
                in_specs=in_specs,
                out_specs=pl.BlockSpec((1, tq, F), lambda b, i: (b, i, 0)),
                scratch_shapes=[pltpu.VMEM((Nkv, HD), jnp.bfloat16),   # K cache
                                pltpu.VMEM((Nkv, HD), jnp.bfloat16)],  # V cache
            ),
            compiler_params=pltpu.CompilerParams(
                # Batch axis parallel (v7x megacore shards on B); the q-tile axis is
                # sequential so the per-batch K/V scratch is filled before it is reused.
                dimension_semantics=("parallel", "arbitrary"),
                vmem_limit_bytes=vmem_limit),
            cost_estimate=cost,
        )

    try:
        call = build(True)
        return jax.block_until_ready(call(xq_b, xkv_b, wq_fd, wk_fd, wv_fd, wo_df))
    except Exception:
        # TODO(synk): this Pallas build rejected single-buffered constant blocks
        # (pipeline_mode=pl.Buffered(1)); fall back to default double buffering.
        call = build(False)
        return call(xq_b, xkv_b, wq_fd, wk_fd, wv_fd, wo_df)


def make_params(key, n_feats, head_dim, n_heads):
    """Deterministic synthetic parameters with PyTorch Linear weight layouts."""
    kq, kkv, ko = jax.random.split(key, 3)
    H, D, F = n_heads, head_dim, n_feats
    scale = 1.0 / math.sqrt(F)
    # PyTorch nn.Linear weight: (out_features, in_features); y = x @ W.T (bias=False)
    w_q = jax.random.uniform(kq, (H * D, F), jnp.float32, -scale, scale)
    w_kv = jax.random.uniform(kkv, (2 * H * D, F), jnp.float32, -scale, scale)
    w_out = jax.random.uniform(ko, (F, H * D), jnp.float32, -scale, scale)
    return w_q, w_kv, w_out


def split_params_for_kernel(w_q, w_kv, w_out, n_feats, head_dim, n_heads):
    """Glue (run ONCE at prep time): PyTorch weights -> lane-dense bf16 kernel layout.

    Wq/Wk/Wv: (F, H*D) with column index h*D + d; 1/sqrt(D) folded into Wq.
    Wo:       (H*D, F).  Cast to bf16 here so no per-call XLA casts are emitted.
    """
    H, D, F = n_heads, head_dim, n_feats
    sm_scale = 1.0 / math.sqrt(D)
    # q: y = x @ w_q.T, output column index = h*D + d
    wq_fd = (w_q.T * sm_scale).astype(jnp.bfloat16)                       # (F, H*D)
    # kv: rearrange 'b n (h d kv) -> kv b n h d' => flat out index = h*D*2 + d*2 + kv
    w_kv_r = w_kv.reshape(H, D, 2, F)
    wk_fd = jnp.transpose(w_kv_r[:, :, 0, :], (2, 0, 1)).reshape(F, H * D)
    wv_fd = jnp.transpose(w_kv_r[:, :, 1, :], (2, 0, 1)).reshape(F, H * D)
    wk_fd = wk_fd.astype(jnp.bfloat16)
    wv_fd = wv_fd.astype(jnp.bfloat16)
    # out_proj: out = ctx @ w_out.T, ctx column index = h*D + d
    wo_df = w_out.T.astype(jnp.bfloat16)                                  # (H*D, F)
    return wq_fd, wk_fd, wv_fd, wo_df


def cross_attention_reference(xq, xkv, w_q, w_kv, w_out, n_feats, head_dim, n_heads):
    """Pure-JAX reference matching the PyTorch module (SDPA branch, no mask)."""
    H, D = n_heads, head_dim
    B, Nq, F = xq.shape
    _, Nkv, _ = xkv.shape
    q = (xq @ w_q.T).reshape(B, Nq, H, D)                        # b n h d
    kv = (xkv @ w_kv.T).reshape(B, Nkv, H, D, 2)                 # b n h d kv
    k = kv[..., 0]
    v = kv[..., 1]
    qh = jnp.transpose(q, (0, 2, 1, 3))                          # b h nq d
    kh = jnp.transpose(k, (0, 2, 1, 3))                          # b h nkv d
    vh = jnp.transpose(v, (0, 2, 1, 3))
    s = jnp.einsum("bhqd,bhkd->bhqk", qh, kh) / math.sqrt(D)
    p = jax.nn.softmax(s, axis=-1)
    o = jnp.einsum("bhqk,bhkd->bhqd", p, vh)                     # b h nq d
    o = jnp.transpose(o, (0, 2, 1, 3)).reshape(B, Nq, H * D)     # b nq (h d)
    return o @ w_out.T


if __name__ == "__main__":
    n_feats, head_dim, n_heads = 32, 16, 2
    B, Nq, Nkv = 2, 8, 16

    key = jax.random.PRNGKey(0)
    kx, kxkv, kp = jax.random.split(key, 3)
    xq = jax.random.normal(kx, (B, Nq, n_feats), jnp.float32)
    xkv = jax.random.normal(kxkv, (B, Nkv, n_feats), jnp.float32)

    w_q, w_kv, w_out = make_params(kp, n_feats, head_dim, n_heads)
    wq_fd, wk_fd, wv_fd, wo_df = split_params_for_kernel(
        w_q, w_kv, w_out, n_feats, head_dim, n_heads)

    out = cross_attention_pallas(xq, xkv, wq_fd, wk_fd, wv_fd, wo_df,
                                 n_heads, head_dim)
    out = jax.block_until_ready(out)

    ref = cross_attention_reference(xq, xkv, w_q, w_kv, w_out,
                                    n_feats, head_dim, n_heads)
    ref = jax.block_until_ready(ref)

    # bf16 MXU operands -> looser tolerance vs the f32 reference.
    np.testing.assert_allclose(np.asarray(out), np.asarray(ref),
                               rtol=2e-2, atol=2e-2)
    print("KERNEL_OK")
</pallas_src>

<mosaic_0001>
module attributes {stable_mosaic.version = 11 : i64} {
  func.func @_cross_attn_kernel(%arg0: i32, %arg1: i32, %arg2: memref<1x8x32xbf16, #tpu.memory_space<vmem>>, %arg3: memref<1x16x32xbf16, #tpu.memory_space<vmem>>, %arg4: memref<32x32xbf16, #tpu.memory_space<vmem>>, %arg5: memref<32x32xbf16, #tpu.memory_space<vmem>>, %arg6: memref<32x32xbf16, #tpu.memory_space<vmem>>, %arg7: memref<32x32xbf16, #tpu.memory_space<vmem>>, %arg8: memref<1x8x32xf32, #tpu.memory_space<vmem>>, %arg9: memref<16x32xbf16, #tpu.memory_space<vmem>>, %arg10: memref<16x32xbf16, #tpu.memory_space<vmem>>) attributes {dimension_semantics = [#tpu.dimension_semantics<parallel>, #tpu.dimension_semantics<arbitrary>], iteration_bounds = array<i64: 2, 1>, scalar_prefetch = 0 : i64, scratch_operands = 2 : i64, tpu.core_type = #tpu.core_type<tc>, window_params = [{transform_indices = @transform_0, window_bounds = array<i64: 1, 8, 32>}, {transform_indices = @transform_1, window_bounds = array<i64: 1, 16, 32>}, {pipeline_mode = #tpu.pipeline_mode<synchronous>, transform_indices = @transform_2, window_bounds = array<i64: 32, 32>}, {pipeline_mode = #tpu.pipeline_mode<synchronous>, transform_indices = @transform_3, window_bounds = array<i64: 32, 32>}, {pipeline_mode = #tpu.pipeline_mode<synchronous>, transform_indices = @transform_4, window_bounds = array<i64: 32, 32>}, {pipeline_mode = #tpu.pipeline_mode<synchronous>, transform_indices = @transform_5, window_bounds = array<i64: 32, 32>}, {transform_indices = @transform_6, window_bounds = array<i64: 1, 8, 32>}]} {
    %c0_i32 = arith.constant 0 : i32
    %0 = arith.cmpi eq, %arg1, %c0_i32 : i32
    %1 = arith.extui %0 : i1 to i32
    %c0_i32_0 = arith.constant 0 : i32
    %2 = arith.cmpi ne, %1, %c0_i32_0 : i32
    scf.if %2 {
      %c0_30 = arith.constant 0 : index
      %c0_31 = arith.constant 0 : index
      %c0_32 = arith.constant 0 : index
      %52 = vector.load %arg3[%c0_30, %c0_31, %c0_32] : memref<1x16x32xbf16, #tpu.memory_space<vmem>>, vector<1x16x32xbf16>
      %53 = vector.shape_cast %52 : vector<1x16x32xbf16> to vector<16x32xbf16>
      %c0_33 = arith.constant 0 : index
      %c0_34 = arith.constant 0 : index
      %54 = vector.load %arg5[%c0_33, %c0_34] : memref<32x32xbf16, #tpu.memory_space<vmem>>, vector<32x32xbf16>
      %cst_35 = arith.constant dense<0.000000e+00> : vector<16x32xf32>
      %55 = tpu.matmul %53, %54, %cst_35 {dimension_numbers = #tpu.dot_dimension_numbers<[1], [0], [0], [1], [0, 0, 1, 1], [], []>} : vector<16x32xbf16>, vector<32x32xbf16>, vector<16x32xf32> -> vector<16x32xf32>
      %56 = arith.truncf %55 : vector<16x32xf32> to vector<16x32xbf16>
      %c0_36 = arith.constant 0 : index
      %c0_37 = arith.constant 0 : index
      %57 = vector.load %arg9[%c0_36, %c0_37] : memref<16x32xbf16, #tpu.memory_space<vmem>>, vector<16x32xbf16>
      tpu.vector_store %arg9[%c0_36, %c0_37], %56 {strides = array<i32>} : memref<16x32xbf16, #tpu.memory_space<vmem>>, vector<16x32xbf16>,
      %c0_38 = arith.constant 0 : index
      %c0_39 = arith.constant 0 : index
      %58 = vector.load %arg6[%c0_38, %c0_39] : memref<32x32xbf16, #tpu.memory_space<vmem>>, vector<32x32xbf16>
      %cst_40 = arith.constant dense<0.000000e+00> : vector<16x32xf32>
      %59 = tpu.matmul %53, %58, %cst_40 {dimension_numbers = #tpu.dot_dimension_numbers<[1], [0], [0], [1], [0, 0, 1, 1], [], []>} : vector<16x32xbf16>, vector<32x32xbf16>, vector<16x32xf32> -> vector<16x32xf32>
      %60 = arith.truncf %59 : vector<16x32xf32> to vector<16x32xbf16>
      %c0_41 = arith.constant 0 : index
      %c0_42 = arith.constant 0 : index
      %61 = vector.load %arg10[%c0_41, %c0_42] : memref<16x32xbf16, #tpu.memory_space<vmem>>, vector<16x32xbf16>
      tpu.vector_store %arg10[%c0_41, %c0_42], %60 {strides = array<i32>} : memref<16x32xbf16, #tpu.memory_space<vmem>>, vector<16x32xbf16>,
    } else {
    }
    %c0 = arith.constant 0 : index
    %c0_1 = arith.constant 0 : index
    %c0_2 = arith.constant 0 : index
    %3 = vector.load %arg2[%c0, %c0_1, %c0_2] : memref<1x8x32xbf16, #tpu.memory_space<vmem>>, vector<1x8x32xbf16>
    %4 = vector.shape_cast %3 : vector<1x8x32xbf16> to vector<8x32xbf16>
    %c0_3 = arith.constant 0 : index
    %c0_4 = arith.constant 0 : index
    %5 = vector.load %arg4[%c0_3, %c0_4] : memref<32x32xbf16, #tpu.memory_space<vmem>>, vector<32x32xbf16>
    %cst = arith.constant dense<0.000000e+00> : vector<8x32xf32>
    %6 = tpu.matmul %4, %5, %cst {dimension_numbers = #tpu.dot_dimension_numbers<[1], [0], [0], [1], [0, 0, 1, 1], [], []>} : vector<8x32xbf16>, vector<32x32xbf16>, vector<8x32xf32> -> vector<8x32xf32>
    %7 = arith.truncf %6 : vector<8x32xf32> to vector<8x32xbf16>
    %cst_5 = arith.constant 0.000000e+00 : f32
    %8 = vector.broadcast %cst_5 : f32 to vector<8x32xf32>
    %9 = vector.extract_strided_slice %7 {offsets = [0, 0], sizes = [8, 16], strides = [1, 1]} : vector<8x32xbf16> to vector<8x16xbf16>
    %c0_6 = arith.constant 0 : index
    %c0_7 = arith.constant 0 : index
    %10 = vector.load %arg9[%c0_6, %c0_7] : memref<16x32xbf16, #tpu.memory_space<vmem>>, vector<16x16xbf16>
    %c0_8 = arith.constant 0 : index
    %c0_9 = arith.constant 0 : index
    %11 = vector.load %arg10[%c0_8, %c0_9] : memref<16x32xbf16, #tpu.memory_space<vmem>>, vector<16x16xbf16>
    %cst_10 = arith.constant dense<0.000000e+00> : vector<8x16xf32>
    %12 = tpu.matmul %9, %10, %cst_10 {dimension_numbers = #tpu.dot_dimension_numbers<[1], [1], [0], [0], [0, 0, 1, 0], [], []>} : vector<8x16xbf16>, vector<16x16xbf16>, vector<8x16xf32> -> vector<8x16xf32>
    %cst_11 = arith.constant dense<0xFF800000> : vector<8xf32>
    %13 = vector.multi_reduction <maximumf>, %12, %cst_11 [1] : vector<8x16xf32> to vector<8xf32>
    %14 = vector.shape_cast %13 : vector<8xf32> to vector<8x1xf32>
    %15 = vector.broadcast %14 : vector<8x1xf32> to vector<8x16xf32>
    %16 = arith.subf %12, %15 : vector<8x16xf32>
    %17 = math.exp %16 : vector<8x16xf32>
    %cst_12 = arith.constant dense<0.000000e+00> : vector<8xf32>
    %18 = vector.multi_reduction <add>, %17, %cst_12 [1] : vector<8x16xf32> to vector<8xf32>
    %19 = vector.shape_cast %18 : vector<8xf32> to vector<8x1xf32>
    %20 = tpu.reciprocal %19 : vector<8x1xf32> -> vector<8x1xf32>
    %21 = vector.broadcast %20 : vector<8x1xf32> to vector<8x16xf32>
    %22 = arith.mulf %17, %21 : vector<8x16xf32>
    %23 = arith.truncf %22 : vector<8x16xf32> to vector<8x16xbf16>
    %cst_13 = arith.constant dense<0.000000e+00> : vector<8x16xf32>
    %24 = tpu.matmul %23, %11, %cst_13 {dimension_numbers = #tpu.dot_dimension_numbers<[1], [0], [0], [1], [0, 0, 1, 1], [], []>} : vector<8x16xbf16>, vector<16x16xbf16>, vector<8x16xf32> -> vector<8x16xf32>
    %25 = arith.truncf %24 : vector<8x16xf32> to vector<8x16xbf16>
    %c0_14 = arith.constant 0 : index
    %c0_15 = arith.constant 0 : index
    %26 = vector.load %arg7[%c0_14, %c0_15] : memref<32x32xbf16, #tpu.memory_space<vmem>>, vector<16x32xbf16>
    %cst_16 = arith.constant dense<0.000000e+00> : vector<8x32xf32>
    %27 = tpu.matmul %25, %26, %cst_16 {dimension_numbers = #tpu.dot_dimension_numbers<[1], [0], [0], [1], [0, 0, 1, 1], [], []>} : vector<8x16xbf16>, vector<16x32xbf16>, vector<8x32xf32> -> vector<8x32xf32>
    %28 = arith.addf %8, %27 : vector<8x32xf32>
    %29 = vector.extract_strided_slice %7 {offsets = [0, 16], sizes = [8, 16], strides = [1, 1]} : vector<8x32xbf16> to vector<8x16xbf16>
    %c0_17 = arith.constant 0 : index
    %c16 = arith.constant 16 : index
    %30 = vector.load %arg9[%c0_17, %c16] : memref<16x32xbf16, #tpu.memory_space<vmem>>, vector<16x16xbf16>
    %c0_18 = arith.constant 0 : index
    %c16_19 = arith.constant 16 : index
    %31 = vector.load %arg10[%c0_18, %c16_19] : memref<16x32xbf16, #tpu.memory_space<vmem>>, vector<16x16xbf16>
    %cst_20 = arith.constant dense<0.000000e+00> : vector<8x16xf32>
    %32 = tpu.matmul %29, %30, %cst_20 {dimension_numbers = #tpu.dot_dimension_numbers<[1], [1], [0], [0], [0, 0, 1, 0], [], []>} : vector<8x16xbf16>, vector<16x16xbf16>, vector<8x16xf32> -> vector<8x16xf32>
    %cst_21 = arith.constant dense<0xFF800000> : vector<8xf32>
    %33 = vector.multi_reduction <maximumf>, %32, %cst_21 [1] : vector<8x16xf32> to vector<8xf32>
    %34 = vector.shape_cast %33 : vector<8xf32> to vector<8x1xf32>
    %35 = vector.broadcast %34 : vector<8x1xf32> to vector<8x16xf32>
    %36 = arith.subf %32, %35 : vector<8x16xf32>
    %37 = math.exp %36 : vector<8x16xf32>
    %cst_22 = arith.constant dense<0.000000e+00> : vector<8xf32>
    %38 = vector.multi_reduction <add>, %37, %cst_22 [1] : vector<8x16xf32> to vector<8xf32>
    %39 = vector.shape_cast %38 : vector<8xf32> to vector<8x1xf32>
    %40 = tpu.reciprocal %39 : vector<8x1xf32> -> vector<8x1xf32>
    %41 = vector.broadcast %40 : vector<8x1xf32> to vector<8x16xf32>
    %42 = arith.mulf %37, %41 : vector<8x16xf32>
    %43 = arith.truncf %42 : vector<8x16xf32> to vector<8x16xbf16>
    %cst_23 = arith.constant dense<0.000000e+00> : vector<8x16xf32>
    %44 = tpu.matmul %43, %31, %cst_23 {dimension_numbers = #tpu.dot_dimension_numbers<[1], [0], [0], [1], [0, 0, 1, 1], [], []>} : vector<8x16xbf16>, vector<16x16xbf16>, vector<8x16xf32> -> vector<8x16xf32>
    %45 = arith.truncf %44 : vector<8x16xf32> to vector<8x16xbf16>
    %c16_24 = arith.constant 16 : index
    %c0_25 = arith.constant 0 : index
    %46 = vector.load %arg7[%c16_24, %c0_25] : memref<32x32xbf16, #tpu.memory_space<vmem>>, vector<16x32xbf16>
    %cst_26 = arith.constant dense<0.000000e+00> : vector<8x32xf32>
    %47 = tpu.matmul %45, %46, %cst_26 {dimension_numbers = #tpu.dot_dimension_numbers<[1], [0], [0], [1], [0, 0, 1, 1], [], []>} : vector<8x16xbf16>, vector<16x32xbf16>, vector<8x32xf32> -> vector<8x32xf32>
    %48 = arith.addf %28, %47 : vector<8x32xf32>
    %c0_27 = arith.constant 0 : index
    %c0_28 = arith.constant 0 : index
    %c0_29 = arith.constant 0 : index
    %49 = vector.load %arg8[%c0_27, %c0_28, %c0_29] : memref<1x8x32xf32, #tpu.memory_space<vmem>>, vector<1x8x32xf32>
    %50 = vector.shape_cast %49 : vector<1x8x32xf32> to vector<8x32xf32>
    %51 = vector.shape_cast %48 : vector<8x32xf32> to vector<1x8x32xf32>
    tpu.vector_store %arg8[%c0_27, %c0_28, %c0_29], %51 {strides = array<i32>} : memref<1x8x32xf32, #tpu.memory_space<vmem>>, vector<1x8x32xf32>,
    return
  }
  func.func @transform_0(%arg0: i32, %arg1: i32) -> (i32, i32, i32) {
    %c0_i32 = arith.constant 0 : i32
    %c0_i32_0 = arith.constant 0 : i32
    return %arg0, %arg1, %c0_i32 : i32, i32, i32
  }
  func.func @transform_1(%arg0: i32, %arg1: i32) -> (i32, i32, i32) {
    %c0_i32 = arith.constant 0 : i32
    %c0_i32_0 = arith.constant 0 : i32
    %c0_i32_1 = arith.constant 0 : i32
    return %arg0, %c0_i32, %c0_i32_0 : i32, i32, i32
  }
  func.func @transform_2(%arg0: i32, %arg1: i32) -> (i32, i32) {
    %c0_i32 = arith.constant 0 : i32
    %c0_i32_0 = arith.constant 0 : i32
    %c0_i32_1 = arith.constant 0 : i32
    return %c0_i32, %c0_i32_0 : i32, i32
  }
  func.func @transform_3(%arg0: i32, %arg1: i32) -> (i32, i32) {
    %c0_i32 = arith.constant 0 : i32
    %c0_i32_0 = arith.constant 0 : i32
    %c0_i32_1 = arith.constant 0 : i32
    return %c0_i32, %c0_i32_0 : i32, i32
  }
  func.func @transform_4(%arg0: i32, %arg1: i32) -> (i32, i32) {
    %c0_i32 = arith.constant 0 : i32
    %c0_i32_0 = arith.constant 0 : i32
    %c0_i32_1 = arith.constant 0 : i32
    return %c0_i32, %c0_i32_0 : i32, i32
  }
  func.func @transform_5(%arg0: i32, %arg1: i32) -> (i32, i32) {
    %c0_i32 = arith.constant 0 : i32
    %c0_i32_0 = arith.constant 0 : i32
    %c0_i32_1 = arith.constant 0 : i32
    return %c0_i32, %c0_i32_0 : i32, i32
  }
  func.func @transform_6(%arg0: i32, %arg1: i32) -> (i32, i32, i32) {
    %c0_i32 = arith.constant 0 : i32
    %c0_i32_0 = arith.constant 0 : i32
    return %arg0, %arg1, %c0_i32 : i32, i32, i32
  }
}

module attributes {stable_mosaic.version = 11 : i64} {
  func.func @_cross_attn_kernel(%arg0: i32, %arg1: i32, %arg2: memref<1x8x32xbf16, #tpu.memory_space<vmem>>, %arg3: memref<1x16x32xbf16, #tpu.memory_space<vmem>>, %arg4: memref<32x32xbf16, #tpu.memory_space<vmem>>, %arg5: memref<32x32xbf16, #tpu.memory_space<vmem>>, %arg6: memref<32x32xbf16, #tpu.memory_space<vmem>>, %arg7: memref<32x32xbf16, #tpu.memory_space<vmem>>, %arg8: memref<1x8x32xf32, #tpu.memory_space<vmem>>, %arg9: memref<16x32xbf16, #tpu.memory_space<vmem>>, %arg10: memref<16x32xbf16, #tpu.memory_space<vmem>>) attributes {dimension_semantics = [#tpu.dimension_semantics<parallel>, #tpu.dimension_semantics<arbitrary>], iteration_bounds = array<i64: 2, 1>, scalar_prefetch = 0 : i64, scratch_operands = 2 : i64, tpu.core_type = #tpu.core_type<tc>, window_params = [{transform_indices = @transform_0, window_bounds = array<i64: 1, 8, 32>}, {transform_indices = @transform_1, window_bounds = array<i64: 1, 16, 32>}, {pipeline_mode = #tpu.pipeline_mode<synchronous>, transform_indices = @transform_2, window_bounds = array<i64: 32, 32>}, {pipeline_mode = #tpu.pipeline_mode<synchronous>, transform_indices = @transform_3, window_bounds = array<i64: 32, 32>}, {pipeline_mode = #tpu.pipeline_mode<synchronous>, transform_indices = @transform_4, window_bounds = array<i64: 32, 32>}, {pipeline_mode = #tpu.pipeline_mode<synchronous>, transform_indices = @transform_5, window_bounds = array<i64: 32, 32>}, {transform_indices = @transform_6, window_bounds = array<i64: 1, 8, 32>}]} {
    %c0_i32 = arith.constant 0 : i32
    %0 = arith.cmpi eq, %arg1, %c0_i32 : i32
    %1 = arith.extui %0 : i1 to i32
    %c0_i32_0 = arith.constant 0 : i32
    %2 = arith.cmpi ne, %1, %c0_i32_0 : i32
    scf.if %2 {
      %c0_30 = arith.constant 0 : index
      %c0_31 = arith.constant 0 : index
      %c0_32 = arith.constant 0 : index
      %52 = vector.load %arg3[%c0_30, %c0_31, %c0_32] : memref<1x16x32xbf16, #tpu.memory_space<vmem>>, vector<1x16x32xbf16>
      %53 = vector.shape_cast %52 : vector<1x16x32xbf16> to vector<16x32xbf16>
      %c0_33 = arith.constant 0 : index
      %c0_34 = arith.constant 0 : index
      %54 = vector.load %arg5[%c0_33, %c0_34] : memref<32x32xbf16, #tpu.memory_space<vmem>>, vector<32x32xbf16>
      %cst_35 = arith.constant dense<0.000000e+00> : vector<16x32xf32>
      %55 = tpu.matmul %53, %54, %cst_35 {dimension_numbers = #tpu.dot_dimension_numbers<[1], [0], [0], [1], [0, 0, 1, 1], [], []>} : vector<16x32xbf16>, vector<32x32xbf16>, vector<16x32xf32> -> vector<16x32xf32>
      %56 = arith.truncf %55 : vector<16x32xf32> to vector<16x32xbf16>
      %c0_36 = arith.constant 0 : index
      %c0_37 = arith.constant 0 : index
      %57 = vector.load %arg9[%c0_36, %c0_37] : memref<16x32xbf16, #tpu.memory_space<vmem>>, vector<16x32xbf16>
      tpu.vector_store %arg9[%c0_36, %c0_37], %56 {strides = array<i32>} : memref<16x32xbf16, #tpu.memory_space<vmem>>, vector<16x32xbf16>,
      %c0_38 = arith.constant 0 : index
      %c0_39 = arith.constant 0 : index
      %58 = vector.load %arg6[%c0_38, %c0_39] : memref<32x32xbf16, #tpu.memory_space<vmem>>, vector<32x32xbf16>
      %cst_40 = arith.constant dense<0.000000e+00> : vector<16x32xf32>
      %59 = tpu.matmul %53, %58, %cst_40 {dimension_numbers = #tpu.dot_dimension_numbers<[1], [0], [0], [1], [0, 0, 1, 1], [], []>} : vector<16x32xbf16>, vector<32x32xbf16>, vector<16x32xf32> -> vector<16x32xf32>
      %60 = arith.truncf %59 : vector<16x32xf32> to vector<16x32xbf16>
      %c0_41 = arith.constant 0 : index
      %c0_42 = arith.constant 0 : index
      %61 = vector.load %arg10[%c0_41, %c0_42] : memref<16x32xbf16, #tpu.memory_space<vmem>>, vector<16x32xbf16>
      tpu.vector_store %arg10[%c0_41, %c0_42], %60 {strides = array<i32>} : memref<16x32xbf16, #tpu.memory_space<vmem>>, vector<16x32xbf16>,
    } else {
    }
    %c0 = arith.constant 0 : index
    %c0_1 = arith.constant 0 : index
    %c0_2 = arith.constant 0 : index
    %3 = vector.load %arg2[%c0, %c0_1, %c0_2] : memref<1x8x32xbf16, #tpu.memory_space<vmem>>, vector<1x8x32xbf16>
    %4 = vector.shape_cast %3 : vector<1x8x32xbf16> to vector<8x32xbf16>
    %c0_3 = arith.constant 0 : index
    %c0_4 = arith.constant 0 : index
    %5 = vector.load %arg4[%c0_3, %c0_4] : memref<32x32xbf16, #tpu.memory_space<vmem>>, vector<32x32xbf16>
    %cst = arith.constant dense<0.000000e+00> : vector<8x32xf32>
    %6 = tpu.matmul %4, %5, %cst {dimension_numbers = #tpu.dot_dimension_numbers<[1], [0], [0], [1], [0, 0, 1, 1], [], []>} : vector<8x32xbf16>, vector<32x32xbf16>, vector<8x32xf32> -> vector<8x32xf32>
    %7 = arith.truncf %6 : vector<8x32xf32> to vector<8x32xbf16>
    %cst_5 = arith.constant 0.000000e+00 : f32
    %8 = vector.broadcast %cst_5 : f32 to vector<8x32xf32>
    %9 = vector.extract_strided_slice %7 {offsets = [0, 0], sizes = [8, 16], strides = [1, 1]} : vector<8x32xbf16> to vector<8x16xbf16>
    %c0_6 = arith.constant 0 : index
    %c0_7 = arith.constant 0 : index
    %10 = vector.load %arg9[%c0_6, %c0_7] : memref<16x32xbf16, #tpu.memory_space<vmem>>, vector<16x16xbf16>
    %c0_8 = arith.constant 0 : index
    %c0_9 = arith.constant 0 : index
    %11 = vector.load %arg10[%c0_8, %c0_9] : memref<16x32xbf16, #tpu.memory_space<vmem>>, vector<16x16xbf16>
    %cst_10 = arith.constant dense<0.000000e+00> : vector<8x16xf32>
    %12 = tpu.matmul %9, %10, %cst_10 {dimension_numbers = #tpu.dot_dimension_numbers<[1], [1], [0], [0], [0, 0, 1, 0], [], []>} : vector<8x16xbf16>, vector<16x16xbf16>, vector<8x16xf32> -> vector<8x16xf32>
    %cst_11 = arith.constant dense<0xFF800000> : vector<8xf32>
    %13 = vector.multi_reduction <maximumf>, %12, %cst_11 [1] : vector<8x16xf32> to vector<8xf32>
    %14 = vector.shape_cast %13 : vector<8xf32> to vector<8x1xf32>
    %15 = vector.broadcast %14 : vector<8x1xf32> to vector<8x16xf32>
    %16 = arith.subf %12, %15 : vector<8x16xf32>
    %17 = math.exp %16 : vector<8x16xf32>
    %cst_12 = arith.constant dense<0.000000e+00> : vector<8xf32>
    %18 = vector.multi_reduction <add>, %17, %cst_12 [1] : vector<8x16xf32> to vector<8xf32>
    %19 = vector.shape_cast %18 : vector<8xf32> to vector<8x1xf32>
    %20 = tpu.reciprocal %19 : vector<8x1xf32> -> vector<8x1xf32>
    %21 = vector.broadcast %20 : vector<8x1xf32> to vector<8x16xf32>
    %22 = arith.mulf %17, %21 : vector<8x16xf32>
    %23 = arith.truncf %22 : vector<8x16xf32> to vector<8x16xbf16>
    %cst_13 = arith.constant dense<0.000000e+00> : vector<8x16xf32>
    %24 = tpu.matmul %23, %11, %cst_13 {dimension_numbers = #tpu.dot_dimension_numbers<[1], [0], [0], [1], [0, 0, 1, 1], [], []>} : vector<8x16xbf16>, vector<16x16xbf16>, vector<8x16xf32> -> vector<8x16xf32>
    %25 = arith.truncf %24 : vector<8x16xf32> to vector<8x16xbf16>
    %c0_14 = arith.constant 0 : index
    %c0_15 = arith.constant 0 : index
    %26 = vector.load %arg7[%c0_14, %c0_15] : memref<32x32xbf16, #tpu.memory_space<vmem>>, vector<16x32xbf16>
    %cst_16 = arith.constant dense<0.000000e+00> : vector<8x32xf32>
    %27 = tpu.matmul %25, %26, %cst_16 {dimension_numbers = #tpu.dot_dimension_numbers<[1], [0], [0], [1], [0, 0, 1, 1], [], []>} : vector<8x16xbf16>, vector<16x32xbf16>, vector<8x32xf32> -> vector<8x32xf32>
    %28 = arith.addf %8, %27 : vector<8x32xf32>
    %29 = vector.extract_strided_slice %7 {offsets = [0, 16], sizes = [8, 16], strides = [1, 1]} : vector<8x32xbf16> to vector<8x16xbf16>
    %c0_17 = arith.constant 0 : index
    %c16 = arith.constant 16 : index
    %30 = vector.load %arg9[%c0_17, %c16] : memref<16x32xbf16, #tpu.memory_space<vmem>>, vector<16x16xbf16>
    %c0_18 = arith.constant 0 : index
    %c16_19 = arith.constant 16 : index
    %31 = vector.load %arg10[%c0_18, %c16_19] : memref<16x32xbf16, #tpu.memory_space<vmem>>, vector<16x16xbf16>
    %cst_20 = arith.constant dense<0.000000e+00> : vector<8x16xf32>
    %32 = tpu.matmul %29, %30, %cst_20 {dimension_numbers = #tpu.dot_dimension_numbers<[1], [1], [0], [0], [0, 0, 1, 0], [], []>} : vector<8x16xbf16>, vector<16x16xbf16>, vector<8x16xf32> -> vector<8x16xf32>
    %cst_21 = arith.constant dense<0xFF800000> : vector<8xf32>
    %33 = vector.multi_reduction <maximumf>, %32, %cst_21 [1] : vector<8x16xf32> to vector<8xf32>
    %34 = vector.shape_cast %33 : vector<8xf32> to vector<8x1xf32>
    %35 = vector.broadcast %34 : vector<8x1xf32> to vector<8x16xf32>
    %36 = arith.subf %32, %35 : vector<8x16xf32>
    %37 = math.exp %36 : vector<8x16xf32>
    %cst_22 = arith.constant dense<0.000000e+00> : vector<8xf32>
    %38 = vector.multi_reduction <add>, %37, %cst_22 [1] : vector<8x16xf32> to vector<8xf32>
    %39 = vector.shape_cast %38 : vector<8xf32> to vector<8x1xf32>
    %40 = tpu.reciprocal %39 : vector<8x1xf32> -> vector<8x1xf32>
    %41 = vector.broadcast %40 : vector<8x1xf32> to vector<8x16xf32>
    %42 = arith.mulf %37, %41 : vector<8x16xf32>
    %43 = arith.truncf %42 : vector<8x16xf32> to vector<8x16xbf16>
    %cst_23 = arith.constant dense<0.000000e+00> : vector<8x16xf32>
    %44 = tpu.matmul %43, %31, %cst_23 {dimension_numbers = #tpu.dot_dimension_numbers<[1], [0], [0], [1], [0, 0, 1, 1], [], []>} : vector<8x16xbf16>, vector<16x16xbf16>, vector<8x16xf32> -> vector<8x16xf32>
    %45 = arith.truncf %44 : vector<8x16xf32> to vector<8x16xbf16>
    %c16_24 = arith.constant 16 : index
    %c0_25 = arith.constant 0 : index
    %46 = vector.load %arg7[%c16_24, %c0_25] : memref<32x32xbf16, #tpu.memory_space<vmem>>, vector<16x32xbf16>
    %cst_26 = arith.constant dense<0.000000e+00> : vector<8x32xf32>
    %47 = tpu.matmul %45, %46, %cst_26 {dimension_numbers = #tpu.dot_dimension_numbers<[1], [0], [0], [1], [0, 0, 1, 1], [], []>} : vector<8x16xbf16>, vector<16x32xbf16>, vector<8x32xf32> -> vector<8x32xf32>
    %48 = arith.addf %28, %47 : vector<8x32xf32>
    %c0_27 = arith.constant 0 : index
    %c0_28 = arith.constant 0 : index
    %c0_29 = arith.constant 0 : index
    %49 = vector.load %arg8[%c0_27, %c0_28, %c0_29] : memref<1x8x32xf32, #tpu.memory_space<vmem>>, vector<1x8x32xf32>
    %50 = vector.shape_cast %49 : vector<1x8x32xf32> to vector<8x32xf32>
    %51 = vector.shape_cast %48 : vector<8x32xf32> to vector<1x8x32xf32>
    tpu.vector_store %arg8[%c0_27, %c0_28, %c0_29], %51 {strides = array<i32>} : memref<1x8x32xf32, #tpu.memory_space<vmem>>, vector<1x8x32xf32>,
    return
  }
  func.func @transform_0(%arg0: i32, %arg1: i32) -> (i32, i32, i32) {
    %c0_i32 = arith.constant 0 : i32
    %c0_i32_0 = arith.constant 0 : i32
    return %arg0, %arg1, %c0_i32 : i32, i32, i32
  }
  func.func @transform_1(%arg0: i32, %arg1: i32) -> (i32, i32, i32) {
    %c0_i32 = arith.constant 0 : i32
    %c0_i32_0 = arith.constant 0 : i32
    %c0_i32_1 = arith.constant 0 : i32
    return %arg0, %c0_i32, %c0_i32_0 : i32, i32, i32
  }
  func.func @transform_2(%arg0: i32, %arg1: i32) -> (i32, i32) {
    %c0_i32 = arith.constant 0 : i32
    %c0_i32_0 = arith.constant 0 : i32
    %c0_i32_1 = arith.constant 0 : i32
    return %c0_i32, %c0_i32_0 : i32, i32
  }
  func.func @transform_3(%arg0: i32, %arg1: i32) -> (i32, i32) {
    %c0_i32 = arith.constant 0 : i32
    %c0_i32_0 = arith.constant 0 : i32
    %c0_i32_1 = arith.constant 0 : i32
    return %c0_i32, %c0_i32_0 : i32, i32
  }
  func.func @transform_4(%arg0: i32, %arg1: i32) -> (i32, i32) {
    %c0_i32 = arith.constant 0 : i32
    %c0_i32_0 = arith.constant 0 : i32
    %c0_i32_1 = arith.constant 0 : i32
    return %c0_i32, %c0_i32_0 : i32, i32
  }
  func.func @transform_5(%arg0: i32, %arg1: i32) -> (i32, i32) {
    %c0_i32 = arith.constant 0 : i32
    %c0_i32_0 = arith.constant 0 : i32
    %c0_i32_1 = arith.constant 0 : i32
    return %c0_i32, %c0_i32_0 : i32, i32
  }
  func.func @transform_6(%arg0: i32, %arg1: i32) -> (i32, i32, i32) {
    %c0_i32 = arith.constant 0 : i32
    %c0_i32_0 = arith.constant 0 : i32
    return %arg0, %arg1, %c0_i32 : i32, i32, i32
  }
}

</mosaic_0001>

<llo_original>
// kernel: tpu_custom_call.1
$region0: #{tpu_custom_call.1}
  #allocation0 [shape = 'u32[]', space=smem, size = 0x4, offset = 0x4, fixed_abs, tag = 'smem constant byte address 0x4 - core index']
  #allocation1 [shape = 'u32[144,128]{1,0:T(1,128)}', space=vmem, size = 0x12000, scoped, tag = 'internal scratch']
  #allocation2 [shape = 'bf16[16,32]{1,0:T(16,128)(2,1)}', space=vmem, size = 0x1000, scoped, tag = 'scratch operand']
  #allocation3 [shape = 'bf16[16,32]{1,0:T(16,128)(2,1)}', space=vmem, size = 0x1000, scoped, tag = 'scratch operand']
  %s0 = inlined_call_operand.hbm [shape: bf16[2,8,32], index: 0, kind: input, shape index: {}]
  %s1 = inlined_call_operand.hbm [shape: bf16[2,16,32], index: 1, kind: input, shape index: {}]
  %s2 = inlined_call_operand.hbm [shape: bf16[32,32], index: 2, kind: input, shape index: {}]
  %s3 = inlined_call_operand.hbm [shape: bf16[32,32], index: 3, kind: input, shape index: {}]
  %s4 = inlined_call_operand.hbm [shape: bf16[32,32], index: 4, kind: input, shape index: {}]
  %s5 = inlined_call_operand.vmem [shape: bf16[32,32], index: 5, kind: input, shape index: {}]
  %s6 = inlined_call_operand.hbm [shape: f32[2,8,32], index: 6, kind: output, shape index: {}]
  %s7 = sld [smem:[#allocation0]]
  $region81: #{tpu_custom_call.1} parent=0
    _
  %s9 = ssub.s32 1, %s7
  %s10 = scalar_select 0, %s9, %s7
  $region1: #{tpu_custom_call.1} parent=0
    #allocation4 [shape = 'u8[4096]{0}', space=vmem, size = 0x1000, scoped, tag = 'input window, operand 0']
    #allocation5 [shape = 's32[2]{0}', space=sflag, size = 0x8, scoped, tag = 'scoped memory for tpu_custom_call.1']
    #allocation6 [shape = 's32[2]{0}', space=sflag, size = 0x8, scoped, tag = 'scoped memory for tpu_custom_call.1']
    #allocation7 [shape = 'u8[8192]{0}', space=vmem, size = 0x2000, scoped, tag = 'input window, operand 1']
    #allocation8 [shape = 's32[2]{0}', space=sflag, size = 0x8, scoped, tag = 'scoped memory for tpu_custom_call.1']
    #allocation9 [shape = 'u8[8192]{0}', space=vmem, size = 0x2000, scoped, tag = 'input window, operand 2, single buffered']
    #allocation10 [shape = 'u8[8192]{0}', space=vmem, size = 0x2000, scoped, tag = 'input window, operand 3, single buffered']
    #allocation11 [shape = 's32[1]{0}', space=sflag, size = 0x4, scoped, tag = 'scoped memory for tpu_custom_call.1']
    #allocation12 [shape = 'u8[8192]{0}', space=vmem, size = 0x2000, scoped, tag = 'input window, operand 4, single buffered']
    #allocation13 [shape = 'u8[8192]{0}', space=vmem, size = 0x2000, scoped, tag = 'output window, operand 0']
    %11 = vsyncpa [#allocation5], 0
    %s12 = scalar_lea.sflag [#allocation5], 1
    %13 = vsyncpa %s12, 0
    %14 = vsyncpa [#allocation8], 0
    %s15 = scalar_lea.sflag [#allocation8], 1
    %16 = vsyncpa %s15, 0
    %17 = vsyncpa [#allocation11], 0
    %18 = vsyncpa [#allocation6], 0
    %s19 = scalar_lea.sflag [#allocation6], 1
    %20 = vsyncpa %s19, 0
    loop: start=0, step=1, limit=4
    $region2: #{tpu_custom_call.1} parent=1 // loop_pre_header
      _
    $region3: #{tpu_custom_call.1} parent=1 // loop_header
      %s22 = sphi 0, %s26
      %p23 = scmp.ge.s32.totalorder %s22, 4
      %s29 = sphi 0, %s41
      %s30 = sphi 0, %s37
      %s31 = sphi 0, %s29
      %s32 = sphi 0, %s30
      %s33 = sphi 0, %s31
      %s34 = sphi 0, %s32
      %s46 = sphi 0, %s48
      %s49 = sphi 0, %s46
      %s50 = sphi 0, %s49
      %s66 = sphi 0, %s50
      %s72 = sphi 0, %s74
      %s75 = sphi 0, %s72
      %s76 = sphi 0, %s75
      %s92 = sphi 0, %s76
      %s96 = sphi 0, %s96
      %s98 = sphi 0, %s96
      %s99 = sphi 0, %s98
      %s113 = sphi 0, %s99
      %s117 = sphi 0, %s117
      %s119 = sphi 0, %s117
      %s120 = sphi 0, %s119
      %s134 = sphi 0, %s120
      %s138 = sphi 0, %s138
      %s140 = sphi 0, %s138
      %s141 = sphi 0, %s140
      %s155 = sphi 0, %s141
      %s159 = sphi 0, %s159
      %s161 = sphi 0, %s159
      %s162 = sphi 0, %s161
      %s176 = sphi 0, %s162
      %s184 = sphi 0, %s186
      %s187 = sphi 0, %s184
      %s188 = sphi 0, %s187
      %s204 = sphi 0, %s188
    $region4: #{tpu_custom_call.1} parent=1 // loop_header_branch
      %25 = sbr.rel (%p23) target = $region8
    $region5: #{tpu_custom_call.1} parent=1 // loop_body
      %s27 = ssub.s32 %s22, 1
      %s28 = ssub.s32 %s22, 2
      %s35 = sadd.s32 1, %s30
      %p36 = scmp.ge.s32.totalorder %s35, 1
      %s37 = scalar_select %p36, 0, %s35
      %s38 = sadd.s32 1, %s29
      %s39 = scalar_select %p36, %s38, %s29
      %p40 = scmp.ge.s32.totalorder %s39, 2
      %s41 = scalar_select %p40, 0, %s39
      %s42 = ssub.s32 %s29, %s41
      %s43 = ssub.s32 %s30, %s37
      %s44 = sor.u32 %s42, %s43
      %p45 = scmp.eq.s32.totalorder %s44, 0
      %s47 = sadd.s32 %s46, 1
      %s48 = scalar_select %p45, %s46, %s47
      %p51 = pneg %p45
      %p52 = scmp.eq.s32.totalorder %s22, 1
      %p53 = por %p51, %p52
      %p54 = scmp.ne.s32.totalorder %s46, %s49
      %p55 = scmp.eq.s32.totalorder %s22, 0
      %p56 = por %p54, %p55
      %p57 = scmp.ne.s32.totalorder %s46, %s49
      %p58 = scmp.eq.s32.totalorder %s27, 1
      %p59 = por %p57, %p58
      %p60 = scmp.ne.s32.totalorder %s49, %s50
      %p61 = scmp.eq.s32.totalorder %s27, 0
      %p62 = por %p60, %p61
      %p63 = scmp.ne.s32.totalorder %s49, %s50
      %p64 = scmp.eq.s32.totalorder %s28, 1
      %p65 = por %p63, %p64
      %p67 = scmp.ne.s32.totalorder %s50, %s66
      %p68 = scmp.eq.s32.totalorder %s28, 0
      %p69 = por %p67, %p68
      %s70 = ssub.s32 %s29, %s41
      %p71 = scmp.eq.s32.totalorder %s70, 0
      %s73 = sadd.s32 %s72, 1
      %s74 = scalar_select %p71, %s72, %s73
      %p77 = pneg %p71
      %p78 = scmp.eq.s32.totalorder %s22, 1
      %p79 = por %p77, %p78
      %p80 = scmp.ne.s32.totalorder %s72, %s75
      %p81 = scmp.eq.s32.totalorder %s22, 0
      %p82 = por %p80, %p81
      %p83 = scmp.ne.s32.totalorder %s72, %s75
      %p84 = scmp.eq.s32.totalorder %s27, 1
      %p85 = por %p83, %p84
      %p86 = scmp.ne.s32.totalorder %s75, %s76
      %p87 = scmp.eq.s32.totalorder %s27, 0
      %p88 = por %p86, %p87
      %p89 = scmp.ne.s32.totalorder %s75, %s76
      %p90 = scmp.eq.s32.totalorder %s28, 1
      %p91 = por %p89, %p90
      %p93 = scmp.ne.s32.totalorder %s76, %s92
      %p94 = scmp.eq.s32.totalorder %s28, 0
      %p95 = por %p93, %p94
      %s97 = sadd.s32 %s96, 1
      %p100 = scmp.eq.s32.totalorder %s22, 1
      %p101 = scmp.ne.s32.totalorder %s96, %s98
      %p102 = scmp.eq.s32.totalorder %s22, 0
      %p103 = por %p101, %p102
      %p104 = scmp.ne.s32.totalorder %s96, %s98
      %p105 = scmp.eq.s32.totalorder %s27, 1
      %p106 = por %p104, %p105
      %p107 = scmp.ne.s32.totalorder %s98, %s99
      %p108 = scmp.eq.s32.totalorder %s27, 0
      %p109 = por %p107, %p108
      %p110 = scmp.ne.s32.totalorder %s98, %s99
      %p111 = scmp.eq.s32.totalorder %s28, 1
      %p112 = por %p110, %p111
      %p114 = scmp.ne.s32.totalorder %s99, %s113
      %p115 = scmp.eq.s32.totalorder %s28, 0
      %p116 = por %p114, %p115
      %s118 = sadd.s32 %s117, 1
      %p121 = scmp.eq.s32.totalorder %s22, 1
      %p122 = scmp.ne.s32.totalorder %s117, %s119
      %p123 = scmp.eq.s32.totalorder %s22, 0
      %p124 = por %p122, %p123
      %p125 = scmp.ne.s32.totalorder %s117, %s119
      %p126 = scmp.eq.s32.totalorder %s27, 1
      %p127 = por %p125, %p126
      %p128 = scmp.ne.s32.totalorder %s119, %s120
      %p129 = scmp.eq.s32.totalorder %s27, 0
      %p130 = por %p128, %p129
      %p131 = scmp.ne.s32.totalorder %s119, %s120
      %p132 = scmp.eq.s32.totalorder %s28, 1
      %p133 = por %p131, %p132
      %p135 = scmp.ne.s32.totalorder %s120, %s134
      %p136 = scmp.eq.s32.totalorder %s28, 0
      %p137 = por %p135, %p136
      %s139 = sadd.s32 %s138, 1
      %p142 = scmp.eq.s32.totalorder %s22, 1
      %p143 = scmp.ne.s32.totalorder %s138, %s140
      %p144 = scmp.eq.s32.totalorder %s22, 0
      %p145 = por %p143, %p144
      %p146 = scmp.ne.s32.totalorder %s138, %s140
      %p147 = scmp.eq.s32.totalorder %s27, 1
      %p148 = por %p146, %p147
      %p149 = scmp.ne.s32.totalorder %s140, %s141
      %p150 = scmp.eq.s32.totalorder %s27, 0
      %p151 = por %p149, %p150
      %p152 = scmp.ne.s32.totalorder %s140, %s141
      %p153 = scmp.eq.s32.totalorder %s28, 1
      %p154 = por %p152, %p153
      %p156 = scmp.ne.s32.totalorder %s141, %s155
      %p157 = scmp.eq.s32.totalorder %s28, 0
      %p158 = por %p156, %p157
      %s160 = sadd.s32 %s159, 1
      %p163 = scmp.eq.s32.totalorder %s22, 1
      %p164 = scmp.ne.s32.totalorder %s159, %s161
      %p165 = scmp.eq.s32.totalorder %s22, 0
      %p166 = por %p164, %p165
      %p167 = scmp.ne.s32.totalorder %s159, %s161
      %p168 = scmp.eq.s32.totalorder %s27, 1
      %p169 = por %p167, %p168
      %p170 = scmp.ne.s32.totalorder %s161, %s162
      %p171 = scmp.eq.s32.totalorder %s27, 0
      %p172 = por %p170, %p171
      %p173 = scmp.ne.s32.totalorder %s161, %s162
      %p174 = scmp.eq.s32.totalorder %s28, 1
      %p175 = por %p173, %p174
      %p177 = scmp.ne.s32.totalorder %s162, %s176
      %p178 = scmp.eq.s32.totalorder %s28, 0
      %p179 = por %p177, %p178
      %s180 = ssub.s32 %s29, %s41
      %s181 = ssub.s32 %s30, %s37
      %s182 = sor.u32 %s180, %s181
      %p183 = scmp.eq.s32.totalorder %s182, 0
      %s185 = sadd.s32 %s184, 1
      %s186 = scalar_select %p183, %s184, %s185
      %p189 = pneg %p183
      %p190 = scmp.eq.s32.totalorder %s22, 1
      %p191 = por %p189, %p190
      %p192 = scmp.ne.s32.totalorder %s184, %s187
      %p193 = scmp.eq.s32.totalorder %s22, 0
      %p194 = por %p192, %p193
      %p195 = scmp.ne.s32.totalorder %s184, %s187
      %p196 = scmp.eq.s32.totalorder %s27, 1
      %p197 = por %p195, %p196
      %p198 = scmp.ne.s32.totalorder %s187, %s188
      %p199 = scmp.eq.s32.totalorder %s27, 0
      %p200 = por %p198, %p199
      %p201 = scmp.ne.s32.totalorder %s187, %s188
      %p202 = scmp.eq.s32.totalorder %s28, 1
      %p203 = por %p201, %p202
      %p205 = scmp.ne.s32.totalorder %s188, %s204
      %p206 = scmp.eq.s32.totalorder %s28, 0
      %p207 = por %p205, %p206
      %p208 = scmp.le.s32.totalorder 1, %s22
      %p209 = scmp.lt.s32.totalorder %s22, 3
      %p210 = pnand %p208, %p209
      %p211 = pneg %p210
      // Predicated region
      $region9: #{tpu_custom_call.1} parent=5 // pred_check
        _
      $region10: #{tpu_custom_call.1} parent=5 // pred_check_branch
        %213 = sbr.rel (%p210) target = $region12
      $region11: #{tpu_custom_call.1} parent=5 // pred_region
        %s214 = ssub.s32 %s22, 1
        // Predicated region
        $region13: #{tpu_custom_call.1} parent=11 // pred_check
          %p215 = pneg %p109
        $region14: #{tpu_custom_call.1} parent=11 // pred_check_branch
          %217 = sbr.rel (%p215) target = $region16
        $region15: #{tpu_custom_call.1} parent=11 // pred_region
          %s219 = ssub.s32 256, 256
          %220 = vsyncadd [#allocation8], %s219
          %s221 = sshll.u32 [#allocation9], 4
          %s222 = int_to_ptr.vmem [resolvable:$true] %s221
          %227 = dma.hbm_to_vmem [thread:$0]  %s2, 256, %s222, [#allocation8], 64, 64, 4
        $region16: #{tpu_custom_call.1} parent=11 // pred_fallthru
          _
        // Predicated region
        $region17: #{tpu_custom_call.1} parent=11 // pred_check
          %p228 = pneg %p130
        $region18: #{tpu_custom_call.1} parent=11 // pred_check_branch
          %230 = sbr.rel (%p228) target = $region20
        $region19: #{tpu_custom_call.1} parent=11 // pred_region
          %s232 = ssub.s32 256, 256
          %233 = vsyncadd [#allocation11], %s232
          %s234 = sshll.u32 [#allocation10], 4
          %s235 = int_to_ptr.vmem [resolvable:$true] %s234
          %240 = dma.hbm_to_vmem [thread:$0]  %s3, 256, %s235, [#allocation11], 64, 64, 4
        $region20: #{tpu_custom_call.1} parent=11 // pred_fallthru
          _
        // Predicated region
        $region21: #{tpu_custom_call.1} parent=11 // pred_check
          %p241 = pneg %p151
        $region22: #{tpu_custom_call.1} parent=11 // pred_check_branch
          %243 = sbr.rel (%p241) target = $region24
        $region23: #{tpu_custom_call.1} parent=11 // pred_region
          %s245 = ssub.s32 256, 256
          %246 = vsyncadd [#allocation11], %s245
          %s247 = sshll.u32 [#allocation12], 4
          %s248 = int_to_ptr.vmem [resolvable:$true] %s247
          %253 = dma.hbm_to_vmem [thread:$0]  %s4, 256, %s248, [#allocation11], 64, 64, 4
        $region24: #{tpu_custom_call.1} parent=11 // pred_fallthru
          _
        // Predicated region
        $region25: #{tpu_custom_call.1} parent=11 // pred_check
          %p254 = pneg %p172
        $region26: #{tpu_custom_call.1} parent=11 // pred_check_branch
          %256 = sbr.rel (%p254) target = $region28
        $region27: #{tpu_custom_call.1} parent=11 // pred_region
          _
        $region28: #{tpu_custom_call.1} parent=11 // pred_fallthru
          _
      $region12: #{tpu_custom_call.1} parent=5 // pred_fallthru
        _
      %p257 = scmp.lt.s32.totalorder %s22, 2
      // Predicated region
      $region29: #{tpu_custom_call.1} parent=5 // pred_check
        %p258 = pneg %p257
      $region30: #{tpu_custom_call.1} parent=5 // pred_check_branch
        %260 = sbr.rel (%p258) target = $region32
      $region31: #{tpu_custom_call.1} parent=5 // pred_region
        // Predicated region
        $region33: #{tpu_custom_call.1} parent=31 // pred_check
          %p261 = pneg %p56
        $region34: #{tpu_custom_call.1} parent=31 // pred_check_branch
          %263 = sbr.rel (%p261) target = $region36
        $region35: #{tpu_custom_call.1} parent=31 // pred_region
          %s264 = sand.u32 %s46, 1
          %s265 = scalar_lea.sflag [#allocation5], %s264
          %s266 = sand.u32 %s46, 1
          %s267 = smul.addr %s266, 4
          %s268 = scalar_lea.vmem [#allocation4], %s267
          %s270 = ssub.s32 64, 64
          %271 = vsyncadd %s265, %s270
          %s272 = sadd.s32 %s30, %s29
          %s273 = smul.addr %s272, 64
          %s274 = scalar_lea.hbm %s0, %s273
          %s276 = sshll.u32 %s268, 4
          %s277 = int_to_ptr.vmem [resolvable:$true] %s276
          %279 = dma.hbm_to_vmem [thread:$0]  %s274, 64, %s277, %s265
        $region36: #{tpu_custom_call.1} parent=31 // pred_fallthru
          _
        // Predicated region
        $region37: #{tpu_custom_call.1} parent=31 // pred_check
          %p280 = pneg %p82
        $region38: #{tpu_custom_call.1} parent=31 // pred_check_branch
          %282 = sbr.rel (%p280) target = $region40
        $region39: #{tpu_custom_call.1} parent=31 // pred_region
          %s283 = sand.u32 %s22, 1
          %s284 = scalar_lea.sflag [#allocation8], %s283
          %s285 = sand.u32 %s72, 1
          %s286 = smul.addr %s285, 8
          %s287 = scalar_lea.vmem [#allocation7], %s286
          %s289 = ssub.s32 128, 128
          %290 = vsyncadd %s284, %s289
          %s291 = smul.addr %s29, 2
          %s292 = smul.addr %s291, 64
          %s293 = scalar_lea.hbm %s1, %s292
          %s294 = sshll.u32 %s287, 4
          %s295 = int_to_ptr.vmem [resolvable:$true] %s294
          %300 = dma.hbm_to_vmem [thread:$0]  %s293, 128, %s295, %s284, 64, 64, 4
        $region40: #{tpu_custom_call.1} parent=31 // pred_fallthru
          _
      $region32: #{tpu_custom_call.1} parent=5 // pred_fallthru
        _
      %p301 = scmp.le.s32.totalorder 1, %s22
      %p302 = scmp.lt.s32.totalorder %s22, 3
      %p303 = pnand %p301, %p302
      %p304 = pneg %p303
      // Predicated region
      $region41: #{tpu_custom_call.1} parent=5 // pred_check
        _
      $region42: #{tpu_custom_call.1} parent=5 // pred_check_branch
        %306 = sbr.rel (%p303) target = $region44
      $region43: #{tpu_custom_call.1} parent=5 // pred_region
        %s307 = ssub.s32 %s22, 1
        %s308 = sand.u32 %s49, 1
        %s309 = scalar_lea.sflag [#allocation5], %s308
        %s310 = sand.u32 %s49, 1
        %s311 = smul.addr %s310, 4
        %s312 = scalar_lea.vmem [#allocation4], %s311
        // Predicated region
        $region45: #{tpu_custom_call.1} parent=43 // pred_check
          %p313 = pneg %p62
        $region46: #{tpu_custom_call.1} parent=43 // pred_check_branch
          %315 = sbr.rel (%p313) target = $region48
        $region47: #{tpu_custom_call.1} parent=43 // pred_region
          %316 = dma.done %s309, 64
        $region48: #{tpu_custom_call.1} parent=43 // pred_fallthru
          _
        %s317 = sand.u32 %s27, 1
        %s318 = scalar_lea.sflag [#allocation8], %s317
        %s319 = sand.u32 %s75, 1
        %s320 = smul.addr %s319, 8
        %s321 = scalar_lea.vmem [#allocation7], %s320
        // Predicated region
        $region49: #{tpu_custom_call.1} parent=43 // pred_check
          %p322 = pneg %p88
        $region50: #{tpu_custom_call.1} parent=43 // pred_check_branch
          %324 = sbr.rel (%p322) target = $region52
        $region51: #{tpu_custom_call.1} parent=43 // pred_region
          %325 = dma.done %s318, 128
        $region52: #{tpu_custom_call.1} parent=43 // pred_fallthru
          _
        // Predicated region
        $region53: #{tpu_custom_call.1} parent=43 // pred_check
          %p326 = pneg %p109
        $region54: #{tpu_custom_call.1} parent=43 // pred_check_branch
          %328 = sbr.rel (%p326) target = $region56
        $region55: #{tpu_custom_call.1} parent=43 // pred_region
          %329 = dma.done [#allocation8], 256
        $region56: #{tpu_custom_call.1} parent=43 // pred_fallthru
          _
        // Predicated region
        $region57: #{tpu_custom_call.1} parent=43 // pred_check
          %p330 = pneg %p130
        $region58: #{tpu_custom_call.1} parent=43 // pred_check_branch
          %332 = sbr.rel (%p330) target = $region60
        $region59: #{tpu_custom_call.1} parent=43 // pred_region
          %333 = dma.done [#allocation11], 256
        $region60: #{tpu_custom_call.1} parent=43 // pred_fallthru
          _
        // Predicated region
        $region61: #{tpu_custom_call.1} parent=43 // pred_check
          %p334 = pneg %p151
        $region62: #{tpu_custom_call.1} parent=43 // pred_check_branch
          %336 = sbr.rel (%p334) target = $region64
        $region63: #{tpu_custom_call.1} parent=43 // pred_region
          %337 = dma.done [#allocation11], 256
        $region64: #{tpu_custom_call.1} parent=43 // pred_fallthru
          _
        %s338 = sand.u32 %s49, 1
        %s339 = scalar_lea.sflag [#allocation5], %s338
        %s340 = sand.u32 %s49, 1
        %s341 = smul.addr %s340, 4
        %s342 = scalar_lea.vmem [#allocation4], %s341
        %p343 = pneg %p62
        %p344 = pneg %p59
        %s345 = sand.u32 %s27, 1
        %s346 = scalar_lea.sflag [#allocation8], %s345
        %s347 = sand.u32 %s75, 1
        %s348 = smul.addr %s347, 8
        %s349 = scalar_lea.vmem [#allocation7], %s348
        %p350 = pneg %p88
        %p351 = pneg %p85
        %p352 = pneg %p109
        %p353 = pneg %p106
        %p354 = pneg %p130
        %p355 = pneg %p127
        %p356 = pneg %p151
        %p357 = pneg %p148
        %p358 = pneg %p172
        %p359 = pneg %p169
        %p360 = pneg %p200
        %p361 = pneg %p197
        %s362 = sand.u32 %s187, 1
        %s363 = scalar_lea.sflag [#allocation6], %s362
        %s364 = sand.u32 %s187, 1
        %s365 = smul.addr %s364, 8
        %s366 = scalar_lea.vmem [#allocation13], %s365
        %p368 = scmp.eq.s32.totalorder %s32, 0
        // Predicated region
        $region65: #{tpu_custom_call.1} parent=43 // pred_check
          %p369 = pneg %p368
        $region66: #{tpu_custom_call.1} parent=43 // pred_check_branch
          %371 = sbr.rel (%p369) target = $region68
        $region67: #{tpu_custom_call.1} parent=43 // pred_region
          %v372 = vld [vmem:[%s321] sm:$0xf]
          %v373 = vld [vmem:[%s321 + $0x4] sm:$0xf]
          %v374 = vld [vmem:[#allocation10] sm:$0xf]
          %v375 = vld [vmem:[#allocation10 + $0x4] sm:$0xf]
          %v376 = vld [vmem:[#allocation10 + $0x8] sm:$0xf]
          %v377 = vld [vmem:[#allocation10 + $0xc] sm:$0xf]
          %v380 = vunpack.c.l.b16 %v372
          %v381 = vunpack.c.l.b16 %v373
          %v382 = vpack.c.b16 %v381, %v380
          %v387 = vunpack.c.l.b16 %v374
          %v388 = vunpack.c.l.b16 %v375
          %v389 = vunpack.c.l.b16 %v376
          %v390 = vunpack.c.l.b16 %v377
          %v391 = vpack.c.b16 %v388, %v387
          %v392 = vpack.c.b16 %v390, %v389
          %vm395 = vcmask 261120
          %v397 = vsel %vm395, %v382, 0
          %399 = vmatprep.subr.bf16.mxu0 0
          %400 = vmatpush1.bf16.msra.mxu0 %v391
          %401 = vmatprep.subr.bf16.mxu0 0
          %402 = vmatpush1.bf16.msra.mxu0 %v392
          %403 = vmatprep.subr.bf16.mxu0 0
          %404 = vmatpush1.bf16.msra.mxu0 0
          %405 = vmatprep.subr.bf16.mxu0 0
          %406 = vmatpush1.bf16.msra.mxu0 0
          %407 = vmatprep.subr.bf16.mxu0 0
          %408 = vmatpush1.bf16.msra.mxu0 0
          %409 = vmatprep.subr.bf16.mxu0 0
          %410 = vmatpush1.bf16.msra.mxu0 0
          %411 = vmatprep.subr.bf16.mxu0 0
          %412 = vmatpush1.bf16.msra.mxu0 0
          %413 = vmatprep.subr.bf16.mxu0 0
          %414 = vmatpush1.bf16.msra.mxu0 0
          %415 = vmatprep.subr.bf16.mxu0 0
          %416 = vmatpush1.bf16.msra.mxu0 0
          %417 = vmatprep.subr.bf16.mxu0 0
          %418 = vmatpush1.bf16.msra.mxu0 0
          %419 = vmatprep.subr.bf16.mxu0 0
          %420 = vmatpush1.bf16.msra.mxu0 0
          %421 = vmatprep.subr.bf16.mxu0 0
          %422 = vmatpush1.bf16.msra.mxu0 0
          %423 = vmatprep.subr.bf16.mxu0 0
          %424 = vmatpush1.bf16.msra.mxu0 0
          %425 = vmatprep.subr.bf16.mxu0 0
          %426 = vmatpush1.bf16.msra.mxu0 0
          %427 = vmatprep.subr.bf16.mxu0 0
          %428 = vmatpush1.bf16.msra.mxu0 0
          %429 = vmatprep.subr.bf16.mxu0 0
          %430 = vmatpush1.bf16.msra.mxu0 0
          %431 = vmatprep.mubr.bf16.mxu0 0
          %432 = vmatmul.mubr.bf16.gmra.mrb[0].mxu0 %v397
          %v433 = vpop.f32.mrb[0].mxu0
          %v434 = vadd.f32 0.0, %v433
          %v435 = vpop.f32.mrb[0].mxu0
          %v436 = vpop.f32.mrb[0].mxu0
          %v437 = vadd.f32 0.0, %v436
          %v438 = vpop.f32.mrb[0].mxu0
          %439 = vdwg.mxu0
          %v440 = vpack.c.bf16 %v437, %v434
          %441 = vst.msk [vmem:[#allocation2] sm:$0xff] %vm395, %v440
          %v442 = vld [vmem:[#allocation12] sm:$0xf]
          %v443 = vld [vmem:[#allocation12 + $0x4] sm:$0xf]
          %v444 = vld [vmem:[#allocation12 + $0x8] sm:$0xf]
          %v445 = vld [vmem:[#allocation12 + $0xc] sm:$0xf]
          %v450 = vunpack.c.l.b16 %v442
          %v451 = vunpack.c.l.b16 %v443
          %v452 = vunpack.c.l.b16 %v444
          %v453 = vunpack.c.l.b16 %v445
          %v454 = vpack.c.b16 %v451, %v450
          %v455 = vpack.c.b16 %v453, %v452
          %458 = vmatprep.subr.bf16.mxu0 0
          %459 = vmatpush1.bf16.msra.mxu0 %v454
          %460 = vmatprep.subr.bf16.mxu0 0
          %461 = vmatpush1.bf16.msra.mxu0 %v455
          %462 = vmatprep.subr.bf16.mxu0 0
          %463 = vmatpush1.bf16.msra.mxu0 0
          %464 = vmatprep.subr.bf16.mxu0 0
          %465 = vmatpush1.bf16.msra.mxu0 0
          %466 = vmatprep.subr.bf16.mxu0 0
          %467 = vmatpush1.bf16.msra.mxu0 0
          %468 = vmatprep.subr.bf16.mxu0 0
          %469 = vmatpush1.bf16.msra.mxu0 0
          %470 = vmatprep.subr.bf16.mxu0 0
          %471 = vmatpush1.bf16.msra.mxu0 0
          %472 = vmatprep.subr.bf16.mxu0 0
          %473 = vmatpush1.bf16.msra.mxu0 0
          %474 = vmatprep.subr.bf16.mxu0 0
          %475 = vmatpush1.bf16.msra.mxu0 0
          %476 = vmatprep.subr.bf16.mxu0 0
          %477 = vmatpush1.bf16.msra.mxu0 0
          %478 = vmatprep.subr.bf16.mxu0 0
          %479 = vmatpush1.bf16.msra.mxu0 0
          %480 = vmatprep.subr.bf16.mxu0 0
          %481 = vmatpush1.bf16.msra.mxu0 0
          %482 = vmatprep.subr.bf16.mxu0 0
          %483 = vmatpush1.bf16.msra.mxu0 0
          %484 = vmatprep.subr.bf16.mxu0 0
          %485 = vmatpush1.bf16.msra.mxu0 0
          %486 = vmatprep.subr.bf16.mxu0 0
          %487 = vmatpush1.bf16.msra.mxu0 0
          %488 = vmatprep.subr.bf16.mxu0 0
          %489 = vmatpush1.bf16.msra.mxu0 0
          %490 = vmatprep.mubr.bf16.mxu0 0
          %491 = vmatmul.mubr.bf16.gmra.mrb[0].mxu0 %v397
          %v492 = vpop.f32.mrb[0].mxu0
          %v493 = vadd.f32 0.0, %v492
          %v494 = vpop.f32.mrb[0].mxu0
          %v495 = vpop.f32.mrb[0].mxu0
          %v496 = vadd.f32 0.0, %v495
          %v497 = vpop.f32.mrb[0].mxu0
          %498 = vdwg.mxu0
          %v499 = vpack.c.bf16 %v496, %v493
          %500 = vst.msk [vmem:[#allocation3] sm:$0xff] %vm395, %v499
        $region68: #{tpu_custom_call.1} parent=43 // pred_fallthru
          _
        %v501 = vld [vmem:[%s312] sm:$0xf]
        %v502 = vld [vmem:[#allocation9] sm:$0xf]
        %v503 = vld [vmem:[#allocation9 + $0x4] sm:$0xf]
        %v504 = vld [vmem:[#allocation9 + $0x8] sm:$0xf]
        %v505 = vld [vmem:[#allocation9 + $0xc] sm:$0xf]
        %v510 = vunpack.c.l.b16 %v502
        %v511 = vunpack.c.l.b16 %v503
        %v512 = vunpack.c.l.b16 %v504
        %v513 = vunpack.c.l.b16 %v505
        %v514 = vpack.c.b16 %v511, %v510
        %v515 = vpack.c.b16 %v513, %v512
        %vm518 = vcmask 261120
        %v520 = vsel %vm518, %v501, 0
        %522 = vmatprep.subr.bf16.mxu0 0
        %523 = vmatpush1.bf16.msra.mxu0 %v514
        %524 = vmatprep.subr.bf16.mxu0 0
        %525 = vmatpush1.bf16.msra.mxu0 %v515
        %526 = vmatprep.subr.bf16.mxu0 0
        %527 = vmatpush1.bf16.msra.mxu0 0
        %528 = vmatprep.subr.bf16.mxu0 0
        %529 = vmatpush1.bf16.msra.mxu0 0
        %530 = vmatprep.subr.bf16.mxu0 0
        %531 = vmatpush1.bf16.msra.mxu0 0
        %532 = vmatprep.subr.bf16.mxu0 0
        %533 = vmatpush1.bf16.msra.mxu0 0
        %534 = vmatprep.subr.bf16.mxu0 0
        %535 = vmatpush1.bf16.msra.mxu0 0
        %536 = vmatprep.subr.bf16.mxu0 0
        %537 = vmatpush1.bf16.msra.mxu0 0
        %538 = vmatprep.subr.bf16.mxu0 0
        %539 = vmatpush1.bf16.msra.mxu0 0
        %540 = vmatprep.subr.bf16.mxu0 0
        %541 = vmatpush1.bf16.msra.mxu0 0
        %542 = vmatprep.subr.bf16.mxu0 0
        %543 = vmatpush1.bf16.msra.mxu0 0
        %544 = vmatprep.subr.bf16.mxu0 0
        %545 = vmatpush1.bf16.msra.mxu0 0
        %546 = vmatprep.subr.bf16.mxu0 0
        %547 = vmatpush1.bf16.msra.mxu0 0
        %548 = vmatprep.subr.bf16.mxu0 0
        %549 = vmatpush1.bf16.msra.mxu0 0
        %550 = vmatprep.subr.bf16.mxu0 0
        %551 = vmatpush1.bf16.msra.mxu0 0
        %552 = vmatprep.subr.bf16.mxu0 0
        %553 = vmatpush1.bf16.msra.mxu0 0
        %554 = vmatprep.mubr.bf16.mxu0 0
        %555 = vmatmul.mubr.bf16.gmra.mrb[0].mxu0 %v520
        %v556 = vpop.f32.mrb[0].mxu0
        %v557 = vadd.f32 0.0, %v556
        %v558 = vpop.f32.mrb[0].mxu0
        %v559 = vpop.f32.mrb[0].mxu0
        %v560 = vpop.f32.mrb[0].mxu0
        %561 = vdwg.mxu0
        %v562 = vpack.c.bf16 %v557, %v557
        %v563 = vld [vmem:[#allocation2] sm:$0xff]
        %v564 = vld [vmem:[#allocation3] sm:$0xff]
        %vm565 = vcmask 130048
        %v567 = vsel %vm565, %v562, 0
        %v570 = vsel %vm565, %v563, 0
        %572 = vmatprep.subr.bf16.mxu0 0
        %573 = vmatpush1.bf16.xpose.msra.mxu0 %v570
        %574 = vmatprep.subr.bf16.mxu0 0
        %575 = vmatpush1.bf16.xpose.msra.mxu0 0
        %576 = vmatprep.subr.bf16.mxu0 0
        %577 = vmatpush1.bf16.xpose.msra.mxu0 0
        %578 = vmatprep.subr.bf16.mxu0 0
        %579 = vmatpush1.bf16.xpose.msra.mxu0 0
        %580 = vmatprep.subr.bf16.mxu0 0
        %581 = vmatpush1.bf16.xpose.msra.mxu0 0
        %582 = vmatprep.subr.bf16.mxu0 0
        %583 = vmatpush1.bf16.xpose.msra.mxu0 0
        %584 = vmatprep.subr.bf16.mxu0 0
        %585 = vmatpush1.bf16.xpose.msra.mxu0 0
        %586 = vmatprep.subr.bf16.mxu0 0
        %587 = vmatpush1.bf16.xpose.msra.mxu0 0
        %588 = vmatprep.subr.bf16.mxu0 0
        %589 = vmatpush1.bf16.xpose.msra.mxu0 0
        %590 = vmatprep.subr.bf16.mxu0 0
        %591 = vmatpush1.bf16.xpose.msra.mxu0 0
        %592 = vmatprep.subr.bf16.mxu0 0
        %593 = vmatpush1.bf16.xpose.msra.mxu0 0
        %594 = vmatprep.subr.bf16.mxu0 0
        %595 = vmatpush1.bf16.xpose.msra.mxu0 0
        %596 = vmatprep.subr.bf16.mxu0 0
        %597 = vmatpush1.bf16.xpose.msra.mxu0 0
        %598 = vmatprep.subr.bf16.mxu0 0
        %599 = vmatpush1.bf16.xpose.msra.mxu0 0
        %600 = vmatprep.subr.bf16.mxu0 0
        %601 = vmatpush1.bf16.xpose.msra.mxu0 0
        %602 = vmatprep.subr.bf16.mxu0 0
        %603 = vmatpush1.bf16.xpose.msra.mxu0 0
        %604 = vmatprep.mubr.bf16.mxu0 0
        %605 = vmatmul.mubr.bf16.gmra.mrb[0].mxu0 %v567
        %v606 = vpop.f32.mrb[0].mxu0
        %v607 = vadd.f32 0.0, %v606
        %v608 = vpop.f32.mrb[0].mxu0
        %v609 = vpop.f32.mrb[0].mxu0
        %v610 = vpop.f32.mrb[0].mxu0
        %611 = vdwg.mxu0
        %v612 = vsel %vm565, %v607, -inf
        %613 = vmax.xlane.f32.xlu0 %v612
        %v614 = vpop.xlane.xlu0 %613
        %v615 = vsub.f32 %v607, %v614
        %v616 = vmul.f32 %v615, 1.442695
        %v617 = vpow.pop %v616
        %v618 = vsel %vm565, %v617, 0.0
        %619 = vadd.xlane.f32.xlu0 %v618
        %v620 = vpop.xlane.xlu0 %619
        %v621 = vrcp.pop %v620
        %v622 = vmul.f32 %v617, %v621
        %v623 = vpack.c.bf16 %v622, %v622
        %v625 = vsel %vm565, %v623, 0
        %627 = vmatprep.subr.bf16.mxu0 0
        %628 = vmatpush1.bf16.msra.mxu0 %v564
        %629 = vmatprep.subr.bf16.mxu0 0
        %630 = vmatpush1.bf16.msra.mxu0 0
        %631 = vmatprep.subr.bf16.mxu0 0
        %632 = vmatpush1.bf16.msra.mxu0 0
        %633 = vmatprep.subr.bf16.mxu0 0
        %634 = vmatpush1.bf16.msra.mxu0 0
        %635 = vmatprep.subr.bf16.mxu0 0
        %636 = vmatpush1.bf16.msra.mxu0 0
        %637 = vmatprep.subr.bf16.mxu0 0
        %638 = vmatpush1.bf16.msra.mxu0 0
        %639 = vmatprep.subr.bf16.mxu0 0
        %640 = vmatpush1.bf16.msra.mxu0 0
        %641 = vmatprep.subr.bf16.mxu0 0
        %642 = vmatpush1.bf16.msra.mxu0 0
        %643 = vmatprep.subr.bf16.mxu0 0
        %644 = vmatpush1.bf16.msra.mxu0 0
        %645 = vmatprep.subr.bf16.mxu0 0
        %646 = vmatpush1.bf16.msra.mxu0 0
        %647 = vmatprep.subr.bf16.mxu0 0
        %648 = vmatpush1.bf16.msra.mxu0 0
        %649 = vmatprep.subr.bf16.mxu0 0
        %650 = vmatpush1.bf16.msra.mxu0 0
        %651 = vmatprep.subr.bf16.mxu0 0
        %652 = vmatpush1.bf16.msra.mxu0 0
        %653 = vmatprep.subr.bf16.mxu0 0
        %654 = vmatpush1.bf16.msra.mxu0 0
        %655 = vmatprep.subr.bf16.mxu0 0
        %656 = vmatpush1.bf16.msra.mxu0 0
        %657 = vmatprep.subr.bf16.mxu0 0
        %658 = vmatpush1.bf16.msra.mxu0 0
        %659 = vmatprep.mubr.bf16.mxu0 0
        %660 = vmatmul.mubr.bf16.gmra.mrb[0].mxu0 %v625
        %v661 = vpop.f32.mrb[0].mxu0
        %v662 = vadd.f32 0.0, %v661
        %v663 = vpop.f32.mrb[0].mxu0
        %v664 = vpop.f32.mrb[0].mxu0
        %v665 = vpop.f32.mrb[0].mxu0
        %666 = vdwg.mxu0
        %v667 = vpack.c.bf16 %v662, %v662
        %v668 = vld [vmem:[%s5] sm:$0xf]
        %v669 = vld [vmem:[%s5 + $0x4] sm:$0xf]
        %671 = vrot.lane.b32.xlu0 %v562, 112
        %v672 = vpop.permute.xlu0 %671
        %674 = vrot.lane.b32.xlu0 %v563, 112
        %v675 = vpop.permute.xlu0 %674
        %v677 = vsel %vm565, %v672, 0
        %v680 = vsel %vm565, %v675, 0
        %682 = vmatprep.subr.bf16.mxu0 0
        %683 = vmatpush1.bf16.xpose.msra.mxu0 %v680
        %684 = vmatprep.subr.bf16.mxu0 0
        %685 = vmatpush1.bf16.xpose.msra.mxu0 0
        %686 = vmatprep.subr.bf16.mxu0 0
        %687 = vmatpush1.bf16.xpose.msra.mxu0 0
        %688 = vmatprep.subr.bf16.mxu0 0
        %689 = vmatpush1.bf16.xpose.msra.mxu0 0
        %690 = vmatprep.subr.bf16.mxu0 0
        %691 = vmatpush1.bf16.xpose.msra.mxu0 0
        %692 = vmatprep.subr.bf16.mxu0 0
        %693 = vmatpush1.bf16.xpose.msra.mxu0 0
        %694 = vmatprep.subr.bf16.mxu0 0
        %695 = vmatpush1.bf16.xpose.msra.mxu0 0
        %696 = vmatprep.subr.bf16.mxu0 0
        %697 = vmatpush1.bf16.xpose.msra.mxu0 0
        %698 = vmatprep.subr.bf16.mxu0 0
        %699 = vmatpush1.bf16.xpose.msra.mxu0 0
        %700 = vmatprep.subr.bf16.mxu0 0
        %701 = vmatpush1.bf16.xpose.msra.mxu0 0
        %702 = vmatprep.subr.bf16.mxu0 0
        %703 = vmatpush1.bf16.xpose.msra.mxu0 0
        %704 = vmatprep.subr.bf16.mxu0 0
        %705 = vmatpush1.bf16.xpose.msra.mxu0 0
        %706 = vmatprep.subr.bf16.mxu0 0
        %707 = vmatpush1.bf16.xpose.msra.mxu0 0
        %708 = vmatprep.subr.bf16.mxu0 0
        %709 = vmatpush1.bf16.xpose.msra.mxu0 0
        %710 = vmatprep.subr.bf16.mxu0 0
        %711 = vmatpush1.bf16.xpose.msra.mxu0 0
        %712 = vmatprep.subr.bf16.mxu0 0
        %713 = vmatpush1.bf16.xpose.msra.mxu0 0
        %714 = vmatprep.mubr.bf16.mxu0 0
        %715 = vmatmul.mubr.bf16.gmra.mrb[0].mxu0 %v677
        %v716 = vpop.f32.mrb[0].mxu0
        %v717 = vadd.f32 0.0, %v716
        %v718 = vpop.f32.mrb[0].mxu0
        %v719 = vpop.f32.mrb[0].mxu0
        %v720 = vpop.f32.mrb[0].mxu0
        %721 = vdwg.mxu0
        %v722 = vsel %vm565, %v717, -inf
        %723 = vmax.xlane.f32.xlu0 %v722
        %v724 = vpop.xlane.xlu0 %723
        %v725 = vsub.f32 %v717, %v724
        %v726 = vmul.f32 %v725, 1.442695
        %v727 = vpow.pop %v726
        %v728 = vsel %vm565, %v727, 0.0
        %729 = vadd.xlane.f32.xlu0 %v728
        %v730 = vpop.xlane.xlu0 %729
        %v731 = vrcp.pop %v730
        %v732 = vmul.f32 %v727, %v731
        %v733 = vpack.c.bf16 %v732, %v732
        %735 = vrot.lane.b32.xlu0 %v564, 112
        %v736 = vpop.permute.xlu0 %735
        %v739 = vsel %vm565, %v733, 0
        %741 = vmatprep.subr.bf16.mxu0 0
        %742 = vmatpush1.bf16.msra.mxu0 %v736
        %743 = vmatprep.subr.bf16.mxu0 0
        %744 = vmatpush1.bf16.msra.mxu0 0
        %745 = vmatprep.subr.bf16.mxu0 0
        %746 = vmatpush1.bf16.msra.mxu0 0
        %747 = vmatprep.subr.bf16.mxu0 0
        %748 = vmatpush1.bf16.msra.mxu0 0
        %749 = vmatprep.subr.bf16.mxu0 0
        %750 = vmatpush1.bf16.msra.mxu0 0
        %751 = vmatprep.subr.bf16.mxu0 0
        %752 = vmatpush1.bf16.msra.mxu0 0
        %753 = vmatprep.subr.bf16.mxu0 0
        %754 = vmatpush1.bf16.msra.mxu0 0
        %755 = vmatprep.subr.bf16.mxu0 0
        %756 = vmatpush1.bf16.msra.mxu0 0
        %757 = vmatprep.subr.bf16.mxu0 0
        %758 = vmatpush1.bf16.msra.mxu0 0
        %759 = vmatprep.subr.bf16.mxu0 0
        %760 = vmatpush1.bf16.msra.mxu0 0
        %761 = vmatprep.subr.bf16.mxu0 0
        %762 = vmatpush1.bf16.msra.mxu0 0
        %763 = vmatprep.subr.bf16.mxu0 0
        %764 = vmatpush1.bf16.msra.mxu0 0
        %765 = vmatprep.subr.bf16.mxu0 0
        %766 = vmatpush1.bf16.msra.mxu0 0
        %767 = vmatprep.subr.bf16.mxu0 0
        %768 = vmatpush1.bf16.msra.mxu0 0
        %769 = vmatprep.subr.bf16.mxu0 0
        %770 = vmatpush1.bf16.msra.mxu0 0
        %771 = vmatprep.subr.bf16.mxu0 0
        %772 = vmatpush1.bf16.msra.mxu0 0
        %773 = vmatprep.mubr.bf16.mxu0 0
        %774 = vmatmul.mubr.bf16.gmra.mrb[0].mxu0 %v739
        %v775 = vpop.f32.mrb[0].mxu0
        %v776 = vadd.f32 0.0, %v775
        %v777 = vpop.f32.mrb[0].mxu0
        %v778 = vpop.f32.mrb[0].mxu0
        %v779 = vpop.f32.mrb[0].mxu0
        %780 = vdwg.mxu0
        %v781 = vpack.c.bf16 %v776, %v776
        %v782 = vld [vmem:[%s5 + $0x8] sm:$0xf]
        %v783 = vld [vmem:[%s5 + $0xc] sm:$0xf]
        %v786 = vunpack.c.l.b16 %v782
        %v787 = vunpack.c.l.b16 %v783
        %v788 = vpack.c.b16 %v787, %v786
        %v791 = vsel %vm565, %v781, 0
        %793 = vmatprep.subr.bf16.mxu0 0
        %794 = vmatpush1.bf16.msra.mxu0 %v788
        %795 = vmatprep.subr.bf16.mxu0 0
        %796 = vmatpush1.bf16.msra.mxu0 0
        %797 = vmatprep.subr.bf16.mxu0 0
        %798 = vmatpush1.bf16.msra.mxu0 0
        %799 = vmatprep.subr.bf16.mxu0 0
        %800 = vmatpush1.bf16.msra.mxu0 0
        %801 = vmatprep.subr.bf16.mxu0 0
        %802 = vmatpush1.bf16.msra.mxu0 0
        %803 = vmatprep.subr.bf16.mxu0 0
        %804 = vmatpush1.bf16.msra.mxu0 0
        %805 = vmatprep.subr.bf16.mxu0 0
        %806 = vmatpush1.bf16.msra.mxu0 0
        %807 = vmatprep.subr.bf16.mxu0 0
        %808 = vmatpush1.bf16.msra.mxu0 0
        %809 = vmatprep.subr.bf16.mxu0 0
        %810 = vmatpush1.bf16.msra.mxu0 0
        %811 = vmatprep.subr.bf16.mxu0 0
        %812 = vmatpush1.bf16.msra.mxu0 0
        %813 = vmatprep.subr.bf16.mxu0 0
        %814 = vmatpush1.bf16.msra.mxu0 0
        %815 = vmatprep.subr.bf16.mxu0 0
        %816 = vmatpush1.bf16.msra.mxu0 0
        %817 = vmatprep.subr.bf16.mxu0 0
        %818 = vmatpush1.bf16.msra.mxu0 0
        %819 = vmatprep.subr.bf16.mxu0 0
        %820 = vmatpush1.bf16.msra.mxu0 0
        %821 = vmatprep.subr.bf16.mxu0 0
        %822 = vmatpush1.bf16.msra.mxu0 0
        %823 = vmatprep.subr.bf16.mxu0 0
        %824 = vmatpush1.bf16.msra.mxu0 0
        %825 = vmatprep.mubr.bf16.mxu0 0
        %826 = vmatmul.mubr.bf16.gmra.mrb[0].mxu0 %v791
        %v827 = vpop.f32.mrb[0].mxu0
        %v828 = vadd.f32 0.0, %v827
        %v829 = vpop.f32.mrb[0].mxu0
        %v830 = vpop.f32.mrb[0].mxu0
        %v831 = vpop.f32.mrb[0].mxu0
        %832 = vdwg.mxu0
        %v835 = vunpack.c.l.b16 %v668
        %v836 = vunpack.c.l.b16 %v669
        %v837 = vpack.c.b16 %v836, %v835
        %v840 = vsel %vm565, %v667, 0
        %842 = vmatprep.subr.bf16.mxu0 0
        %843 = vmatpush1.bf16.msra.mxu0 %v837
        %844 = vmatprep.subr.bf16.mxu0 0
        %845 = vmatpush1.bf16.msra.mxu0 0
        %846 = vmatprep.subr.bf16.mxu0 0
        %847 = vmatpush1.bf16.msra.mxu0 0
        %848 = vmatprep.subr.bf16.mxu0 0
        %849 = vmatpush1.bf16.msra.mxu0 0
        %850 = vmatprep.subr.bf16.mxu0 0
        %851 = vmatpush1.bf16.msra.mxu0 0
        %852 = vmatprep.subr.bf16.mxu0 0
        %853 = vmatpush1.bf16.msra.mxu0 0
        %854 = vmatprep.subr.bf16.mxu0 0
        %855 = vmatpush1.bf16.msra.mxu0 0
        %856 = vmatprep.subr.bf16.mxu0 0
        %857 = vmatpush1.bf16.msra.mxu0 0
        %858 = vmatprep.subr.bf16.mxu0 0
        %859 = vmatpush1.bf16.msra.mxu0 0
        %860 = vmatprep.subr.bf16.mxu0 0
        %861 = vmatpush1.bf16.msra.mxu0 0
        %862 = vmatprep.subr.bf16.mxu0 0
        %863 = vmatpush1.bf16.msra.mxu0 0
        %864 = vmatprep.subr.bf16.mxu0 0
        %865 = vmatpush1.bf16.msra.mxu0 0
        %866 = vmatprep.subr.bf16.mxu0 0
        %867 = vmatpush1.bf16.msra.mxu0 0
        %868 = vmatprep.subr.bf16.mxu0 0
        %869 = vmatpush1.bf16.msra.mxu0 0
        %870 = vmatprep.subr.bf16.mxu0 0
        %871 = vmatpush1.bf16.msra.mxu0 0
        %872 = vmatprep.subr.bf16.mxu0 0
        %873 = vmatpush1.bf16.msra.mxu0 0
        %874 = vmatprep.mubr.bf16.mxu0 0
        %875 = vmatmul.mubr.bf16.gmra.mrb[0].mxu0 %v840
        %v876 = vpop.f32.mrb[0].mxu0
        %v877 = vadd.f32 %v828, %v876
        %v878 = vpop.f32.mrb[0].mxu0
        %v879 = vpop.f32.mrb[0].mxu0
        %v880 = vpop.f32.mrb[0].mxu0
        %881 = vdwg.mxu0
        %882 = vst.msk [vmem:[%s366] sm:$0xff] %vm518, %v877
        %s883 = sand.u32 %s187, 1
        %s884 = scalar_lea.sflag [#allocation6], %s883
        %s885 = sand.u32 %s187, 1
        %s886 = smul.addr %s885, 8
        %s887 = scalar_lea.vmem [#allocation13], %s886
        // Predicated region
        $region69: #{tpu_custom_call.1} parent=43 // pred_check
          %p888 = pneg %p197
        $region70: #{tpu_custom_call.1} parent=43 // pred_check_branch
          %890 = sbr.rel (%p888) target = $region72
        $region71: #{tpu_custom_call.1} parent=43 // pred_region
          %s892 = ssub.s32 128, 128
          %893 = vsyncadd %s884, %s892
          %s894 = sadd.s32 %s32, %s31
          %s895 = smul.addr %s894, 128
          %s896 = scalar_lea.hbm %s6, %s895
          %s898 = sshll.u32 %s887, 4
          %s899 = int_to_ptr.vmem [resolvable:$true] %s898
          %901 = dma.vmem_to_hbm [thread:$0]  %s899, 128, %s896, %s884
        $region72: #{tpu_custom_call.1} parent=43 // pred_fallthru
          _
      $region44: #{tpu_custom_call.1} parent=5 // pred_fallthru
        _
      %p902 = scmp.le.s32.totalorder 2, %s22
      // Predicated region
      $region73: #{tpu_custom_call.1} parent=5 // pred_check
        %p903 = pneg %p902
      $region74: #{tpu_custom_call.1} parent=5 // pred_check_branch
        %905 = sbr.rel (%p903) target = $region76
      $region75: #{tpu_custom_call.1} parent=5 // pred_region
        %s906 = ssub.s32 %s22, 2
        // Predicated region
        $region77: #{tpu_custom_call.1} parent=75 // pred_check
          %p907 = pneg %p203
        $region78: #{tpu_custom_call.1} parent=75 // pred_check_branch
          %909 = sbr.rel (%p907) target = $region80
        $region79: #{tpu_custom_call.1} parent=75 // pred_region
          %s910 = sand.u32 %s188, 1
          %s911 = scalar_lea.sflag [#allocation6], %s910
          %s912 = sand.u32 %s188, 1
          %s913 = smul.addr %s912, 8
          %s914 = scalar_lea.vmem [#allocation13], %s913
          %915 = dma.done %s911, 128
        $region80: #{tpu_custom_call.1} parent=75 // pred_fallthru
          _
      $region76: #{tpu_custom_call.1} parent=5 // pred_fallthru
        _
    $region6: #{tpu_custom_call.1} parent=1 // loop_footer
      %s26 = sadd.s32 1, %s22
    $region7: #{tpu_custom_call.1} parent=1 // loop_footer_branch
      %21 = sbr.rel target = $region3
    $region8: #{tpu_custom_call.1} parent=1 // loop_exit
      _
    %916 = vsyncpa [#allocation5], 1
    %s917 = scalar_lea.sflag [#allocation5], 1
    %918 = vsyncpa %s917, 1
    %919 = vsyncpa [#allocation8], 1
    %s920 = scalar_lea.sflag [#allocation8], 1
    %921 = vsyncpa %s920, 1
    %922 = vsyncpa [#allocation11], 1
    %923 = vsyncpa [#allocation6], 1
    %s924 = scalar_lea.sflag [#allocation6], 1
    %925 = vsyncpa %s924, 1

// kernel: tpu_custom_call.1
$region0: #{tpu_custom_call.1}
  #allocation0 [shape = 'u32[]', space=smem, size = 0x4, offset = 0x4, fixed_abs, tag = 'smem constant byte address 0x4 - core index']
  #allocation1 [shape = 'u32[144,128]{1,0:T(1,128)}', space=vmem, size = 0x12000, scoped, tag = 'internal scratch']
  #allocation2 [shape = 'bf16[16,32]{1,0:T(16,128)(2,1)}', space=vmem, size = 0x1000, scoped, tag = 'scratch operand']
  #allocation3 [shape = 'bf16[16,32]{1,0:T(16,128)(2,1)}', space=vmem, size = 0x1000, scoped, tag = 'scratch operand']
  %s0 = inlined_call_operand.hbm [shape: bf16[2,8,32], index: 0, kind: input, shape index: {}]
  %s1 = inlined_call_operand.hbm [shape: bf16[2,16,32], index: 1, kind: input, shape index: {}]
  %s2 = inlined_call_operand.hbm [shape: bf16[32,32], index: 2, kind: input, shape index: {}]
  %s3 = inlined_call_operand.hbm [shape: bf16[32,32], index: 3, kind: input, shape index: {}]
  %s4 = inlined_call_operand.hbm [shape: bf16[32,32], index: 4, kind: input, shape index: {}]
  %s5 = inlined_call_operand.vmem [shape: bf16[32,32], index: 5, kind: input, shape index: {}]
  %s6 = inlined_call_operand.hbm [shape: f32[2,8,32], index: 6, kind: output, shape index: {}]
  %s7 = sld [smem:[#allocation0]]
  $region81: #{tpu_custom_call.1} parent=0
    _
  %s9 = ssub.s32 1, %s7
  %s10 = scalar_select 0, %s9, %s7
  $region1: #{tpu_custom_call.1} parent=0
    #allocation4 [shape = 'u8[4096]{0}', space=vmem, size = 0x1000, scoped, tag = 'input window, operand 0']
    #allocation5 [shape = 's32[2]{0}', space=sflag, size = 0x8, scoped, tag = 'scoped memory for tpu_custom_call.1']
    #allocation6 [shape = 's32[2]{0}', space=sflag, size = 0x8, scoped, tag = 'scoped memory for tpu_custom_call.1']
    #allocation7 [shape = 'u8[8192]{0}', space=vmem, size = 0x2000, scoped, tag = 'input window, operand 1']
    #allocation8 [shape = 's32[2]{0}', space=sflag, size = 0x8, scoped, tag = 'scoped memory for tpu_custom_call.1']
    #allocation9 [shape = 'u8[8192]{0}', space=vmem, size = 0x2000, scoped, tag = 'input window, operand 2, single buffered']
    #allocation10 [shape = 'u8[8192]{0}', space=vmem, size = 0x2000, scoped, tag = 'input window, operand 3, single buffered']
    #allocation11 [shape = 's32[1]{0}', space=sflag, size = 0x4, scoped, tag = 'scoped memory for tpu_custom_call.1']
    #allocation12 [shape = 'u8[8192]{0}', space=vmem, size = 0x2000, scoped, tag = 'input window, operand 4, single buffered']
    #allocation13 [shape = 'u8[8192]{0}', space=vmem, size = 0x2000, scoped, tag = 'output window, operand 0']
    %11 = vsyncpa [#allocation5], 0
    %s12 = scalar_lea.sflag [#allocation5], 1
    %13 = vsyncpa %s12, 0
    %14 = vsyncpa [#allocation8], 0
    %s15 = scalar_lea.sflag [#allocation8], 1
    %16 = vsyncpa %s15, 0
    %17 = vsyncpa [#allocation11], 0
    %18 = vsyncpa [#allocation6], 0
    %s19 = scalar_lea.sflag [#allocation6], 1
    %20 = vsyncpa %s19, 0
    loop: start=0, step=1, limit=4
    $region2: #{tpu_custom_call.1} parent=1 // loop_pre_header
      _
    $region3: #{tpu_custom_call.1} parent=1 // loop_header
      %s22 = sphi 0, %s26
      %p23 = scmp.ge.s32.totalorder %s22, 4
      %s29 = sphi 0, %s41
      %s30 = sphi 0, %s37
      %s31 = sphi 0, %s29
      %s32 = sphi 0, %s30
      %s33 = sphi 0, %s31
      %s34 = sphi 0, %s32
      %s46 = sphi 0, %s48
      %s49 = sphi 0, %s46
      %s50 = sphi 0, %s49
      %s66 = sphi 0, %s50
      %s72 = sphi 0, %s74
      %s75 = sphi 0, %s72
      %s76 = sphi 0, %s75
      %s92 = sphi 0, %s76
      %s96 = sphi 0, %s96
      %s98 = sphi 0, %s96
      %s99 = sphi 0, %s98
      %s113 = sphi 0, %s99
      %s117 = sphi 0, %s117
      %s119 = sphi 0, %s117
      %s120 = sphi 0, %s119
      %s134 = sphi 0, %s120
      %s138 = sphi 0, %s138
      %s140 = sphi 0, %s138
      %s141 = sphi 0, %s140
      %s155 = sphi 0, %s141
      %s159 = sphi 0, %s159
      %s161 = sphi 0, %s159
      %s162 = sphi 0, %s161
      %s176 = sphi 0, %s162
      %s184 = sphi 0, %s186
      %s187 = sphi 0, %s184
      %s188 = sphi 0, %s187
      %s204 = sphi 0, %s188
    $region4: #{tpu_custom_call.1} parent=1 // loop_header_branch
      %25 = sbr.rel (%p23) target = $region8
    $region5: #{tpu_custom_call.1} parent=1 // loop_body
      %s27 = ssub.s32 %s22, 1
      %s28 = ssub.s32 %s22, 2
      %s35 = sadd.s32 1, %s30
      %p36 = scmp.ge.s32.totalorder %s35, 1
      %s37 = scalar_select %p36, 0, %s35
      %s38 = sadd.s32 1, %s29
      %s39 = scalar_select %p36, %s38, %s29
      %p40 = scmp.ge.s32.totalorder %s39, 2
      %s41 = scalar_select %p40, 0, %s39
      %s42 = ssub.s32 %s29, %s41
      %s43 = ssub.s32 %s30, %s37
      %s44 = sor.u32 %s42, %s43
      %p45 = scmp.eq.s32.totalorder %s44, 0
      %s47 = sadd.s32 %s46, 1
      %s48 = scalar_select %p45, %s46, %s47
      %p51 = pneg %p45
      %p52 = scmp.eq.s32.totalorder %s22, 1
      %p53 = por %p51, %p52
      %p54 = scmp.ne.s32.totalorder %s46, %s49
      %p55 = scmp.eq.s32.totalorder %s22, 0
      %p56 = por %p54, %p55
      %p57 = scmp.ne.s32.totalorder %s46, %s49
      %p58 = scmp.eq.s32.totalorder %s27, 1
      %p59 = por %p57, %p58
      %p60 = scmp.ne.s32.totalorder %s49, %s50
      %p61 = scmp.eq.s32.totalorder %s27, 0
      %p62 = por %p60, %p61
      %p63 = scmp.ne.s32.totalorder %s49, %s50
      %p64 = scmp.eq.s32.totalorder %s28, 1
      %p65 = por %p63, %p64
      %p67 = scmp.ne.s32.totalorder %s50, %s66
      %p68 = scmp.eq.s32.totalorder %s28, 0
      %p69 = por %p67, %p68
      %s70 = ssub.s32 %s29, %s41
      %p71 = scmp.eq.s32.totalorder %s70, 0
      %s73 = sadd.s32 %s72, 1
      %s74 = scalar_select %p71, %s72, %s73
      %p77 = pneg %p71
      %p78 = scmp.eq.s32.totalorder %s22, 1
      %p79 = por %p77, %p78
      %p80 = scmp.ne.s32.totalorder %s72, %s75
      %p81 = scmp.eq.s32.totalorder %s22, 0
      %p82 = por %p80, %p81
      %p83 = scmp.ne.s32.totalorder %s72, %s75
      %p84 = scmp.eq.s32.totalorder %s27, 1
      %p85 = por %p83, %p84
      %p86 = scmp.ne.s32.totalorder %s75, %s76
      %p87 = scmp.eq.s32.totalorder %s27, 0
      %p88 = por %p86, %p87
      %p89 = scmp.ne.s32.totalorder %s75, %s76
      %p90 = scmp.eq.s32.totalorder %s28, 1
      %p91 = por %p89, %p90
      %p93 = scmp.ne.s32.totalorder %s76, %s92
      %p94 = scmp.eq.s32.totalorder %s28, 0
      %p95 = por %p93, %p94
      %s97 = sadd.s32 %s96, 1
      %p100 = scmp.eq.s32.totalorder %s22, 1
      %p101 = scmp.ne.s32.totalorder %s96, %s98
      %p102 = scmp.eq.s32.totalorder %s22, 0
      %p103 = por %p101, %p102
      %p104 = scmp.ne.s32.totalorder %s96, %s98
      %p105 = scmp.eq.s32.totalorder %s27, 1
      %p106 = por %p104, %p105
      %p107 = scmp.ne.s32.totalorder %s98, %s99
      %p108 = scmp.eq.s32.totalorder %s27, 0
      %p109 = por %p107, %p108
      %p110 = scmp.ne.s32.totalorder %s98, %s99
      %p111 = scmp.eq.s32.totalorder %s28, 1
      %p112 = por %p110, %p111
      %p114 = scmp.ne.s32.totalorder %s99, %s113
      %p115 = scmp.eq.s32.totalorder %s28, 0
      %p116 = por %p114, %p115
      %s118 = sadd.s32 %s117, 1
      %p121 = scmp.eq.s32.totalorder %s22, 1
      %p122 = scmp.ne.s32.totalorder %s117, %s119
      %p123 = scmp.eq.s32.totalorder %s22, 0
      %p124 = por %p122, %p123
      %p125 = scmp.ne.s32.totalorder %s117, %s119
      %p126 = scmp.eq.s32.totalorder %s27, 1
      %p127 = por %p125, %p126
      %p128 = scmp.ne.s32.totalorder %s119, %s120
      %p129 = scmp.eq.s32.totalorder %s27, 0
      %p130 = por %p128, %p129
      %p131 = scmp.ne.s32.totalorder %s119, %s120
      %p132 = scmp.eq.s32.totalorder %s28, 1
      %p133 = por %p131, %p132
      %p135 = scmp.ne.s32.totalorder %s120, %s134
      %p136 = scmp.eq.s32.totalorder %s28, 0
      %p137 = por %p135, %p136
      %s139 = sadd.s32 %s138, 1
      %p142 = scmp.eq.s32.totalorder %s22, 1
      %p143 = scmp.ne.s32.totalorder %s138, %s140
      %p144 = scmp.eq.s32.totalorder %s22, 0
      %p145 = por %p143, %p144
      %p146 = scmp.ne.s32.totalorder %s138, %s140
      %p147 = scmp.eq.s32.totalorder %s27, 1
      %p148 = por %p146, %p147
      %p149 = scmp.ne.s32.totalorder %s140, %s141
      %p150 = scmp.eq.s32.totalorder %s27, 0
      %p151 = por %p149, %p150
      %p152 = scmp.ne.s32.totalorder %s140, %s141
      %p153 = scmp.eq.s32.totalorder %s28, 1
      %p154 = por %p152, %p153
      %p156 = scmp.ne.s32.totalorder %s141, %s155
      %p157 = scmp.eq.s32.totalorder %s28, 0
      %p158 = por %p156, %p157
      %s160 = sadd.s32 %s159, 1
      %p163 = scmp.eq.s32.totalorder %s22, 1
      %p164 = scmp.ne.s32.totalorder %s159, %s161
      %p165 = scmp.eq.s32.totalorder %s22, 0
      %p166 = por %p164, %p165
      %p167 = scmp.ne.s32.totalorder %s159, %s161
      %p168 = scmp.eq.s32.totalorder %s27, 1
      %p169 = por %p167, %p168
      %p170 = scmp.ne.s32.totalorder %s161, %s162
      %p171 = scmp.eq.s32.totalorder %s27, 0
      %p172 = por %p170, %p171
      %p173 = scmp.ne.s32.totalorder %s161, %s162
      %p174 = scmp.eq.s32.totalorder %s28, 1
      %p175 = por %p173, %p174
      %p177 = scmp.ne.s32.totalorder %s162, %s176
      %p178 = scmp.eq.s32.totalorder %s28, 0
      %p179 = por %p177, %p178
      %s180 = ssub.s32 %s29, %s41
      %s181 = ssub.s32 %s30, %s37
      %s182 = sor.u32 %s180, %s181
      %p183 = scmp.eq.s32.totalorder %s182, 0
      %s185 = sadd.s32 %s184, 1
      %s186 = scalar_select %p183, %s184, %s185
      %p189 = pneg %p183
      %p190 = scmp.eq.s32.totalorder %s22, 1
      %p191 = por %p189, %p190
      %p192 = scmp.ne.s32.totalorder %s184, %s187
      %p193 = scmp.eq.s32.totalorder %s22, 0
      %p194 = por %p192, %p193
      %p195 = scmp.ne.s32.totalorder %s184, %s187
      %p196 = scmp.eq.s32.totalorder %s27, 1
      %p197 = por %p195, %p196
      %p198 = scmp.ne.s32.totalorder %s187, %s188
      %p199 = scmp.eq.s32.totalorder %s27, 0
      %p200 = por %p198, %p199
      %p201 = scmp.ne.s32.totalorder %s187, %s188
      %p202 = scmp.eq.s32.totalorder %s28, 1
      %p203 = por %p201, %p202
      %p205 = scmp.ne.s32.totalorder %s188, %s204
      %p206 = scmp.eq.s32.totalorder %s28, 0
      %p207 = por %p205, %p206
      %p208 = scmp.le.s32.totalorder 1, %s22
      %p209 = scmp.lt.s32.totalorder %s22, 3
      %p210 = pnand %p208, %p209
      %p211 = pneg %p210
      // Predicated region
      $region9: #{tpu_custom_call.1} parent=5 // pred_check
        _
      $region10: #{tpu_custom_call.1} parent=5 // pred_check_branch
        %213 = sbr.rel (%p210) target = $region12
      $region11: #{tpu_custom_call.1} parent=5 // pred_region
        %s214 = ssub.s32 %s22, 1
        // Predicated region
        $region13: #{tpu_custom_call.1} parent=11 // pred_check
          %p215 = pneg %p109
        $region14: #{tpu_custom_call.1} parent=11 // pred_check_branch
          %217 = sbr.rel (%p215) target = $region16
        $region15: #{tpu_custom_call.1} parent=11 // pred_region
          %s219 = ssub.s32 256, 256
          %220 = vsyncadd [#allocation8], %s219
          %s221 = sshll.u32 [#allocation9], 4
          %s222 = int_to_ptr.vmem [resolvable:$true] %s221
          %227 = dma.hbm_to_vmem [thread:$0]  %s2, 256, %s222, [#allocation8], 64, 64, 4
        $region16: #{tpu_custom_call.1} parent=11 // pred_fallthru
          _
        // Predicated region
        $region17: #{tpu_custom_call.1} parent=11 // pred_check
          %p228 = pneg %p130
        $region18: #{tpu_custom_call.1} parent=11 // pred_check_branch
          %230 = sbr.rel (%p228) target = $region20
        $region19: #{tpu_custom_call.1} parent=11 // pred_region
          %s232 = ssub.s32 256, 256
          %233 = vsyncadd [#allocation11], %s232
          %s234 = sshll.u32 [#allocation10], 4
          %s235 = int_to_ptr.vmem [resolvable:$true] %s234
          %240 = dma.hbm_to_vmem [thread:$0]  %s3, 256, %s235, [#allocation11], 64, 64, 4
        $region20: #{tpu_custom_call.1} parent=11 // pred_fallthru
          _
        // Predicated region
        $region21: #{tpu_custom_call.1} parent=11 // pred_check
          %p241 = pneg %p151
        $region22: #{tpu_custom_call.1} parent=11 // pred_check_branch
          %243 = sbr.rel (%p241) target = $region24
        $region23: #{tpu_custom_call.1} parent=11 // pred_region
          %s245 = ssub.s32 256, 256
          %246 = vsyncadd [#allocation11], %s245
          %s247 = sshll.u32 [#allocation12], 4
          %s248 = int_to_ptr.vmem [resolvable:$true] %s247
          %253 = dma.hbm_to_vmem [thread:$0]  %s4, 256, %s248, [#allocation11], 64, 64, 4
        $region24: #{tpu_custom_call.1} parent=11 // pred_fallthru
          _
        // Predicated region
        $region25: #{tpu_custom_call.1} parent=11 // pred_check
          %p254 = pneg %p172
        $region26: #{tpu_custom_call.1} parent=11 // pred_check_branch
          %256 = sbr.rel (%p254) target = $region28
        $region27: #{tpu_custom_call.1} parent=11 // pred_region
          _
        $region28: #{tpu_custom_call.1} parent=11 // pred_fallthru
          _
      $region12: #{tpu_custom_call.1} parent=5 // pred_fallthru
        _
      %p257 = scmp.lt.s32.totalorder %s22, 2
      // Predicated region
      $region29: #{tpu_custom_call.1} parent=5 // pred_check
        %p258 = pneg %p257
      $region30: #{tpu_custom_call.1} parent=5 // pred_check_branch
        %260 = sbr.rel (%p258) target = $region32
      $region31: #{tpu_custom_call.1} parent=5 // pred_region
        // Predicated region
        $region33: #{tpu_custom_call.1} parent=31 // pred_check
          %p261 = pneg %p56
        $region34: #{tpu_custom_call.1} parent=31 // pred_check_branch
          %263 = sbr.rel (%p261) target = $region36
        $region35: #{tpu_custom_call.1} parent=31 // pred_region
          %s264 = sand.u32 %s46, 1
          %s265 = scalar_lea.sflag [#allocation5], %s264
          %s266 = sand.u32 %s46, 1
          %s267 = smul.addr %s266, 4
          %s268 = scalar_lea.vmem [#allocation4], %s267
          %s270 = ssub.s32 64, 64
          %271 = vsyncadd %s265, %s270
          %s272 = sadd.s32 %s30, %s29
          %s273 = smul.addr %s272, 64
          %s274 = scalar_lea.hbm %s0, %s273
          %s276 = sshll.u32 %s268, 4
          %s277 = int_to_ptr.vmem [resolvable:$true] %s276
          %279 = dma.hbm_to_vmem [thread:$0]  %s274, 64, %s277, %s265
        $region36: #{tpu_custom_call.1} parent=31 // pred_fallthru
          _
        // Predicated region
        $region37: #{tpu_custom_call.1} parent=31 // pred_check
          %p280 = pneg %p82
        $region38: #{tpu_custom_call.1} parent=31 // pred_check_branch
          %282 = sbr.rel (%p280) target = $region40
        $region39: #{tpu_custom_call.1} parent=31 // pred_region
          %s283 = sand.u32 %s22, 1
          %s284 = scalar_lea.sflag [#allocation8], %s283
          %s285 = sand.u32 %s72, 1
          %s286 = smul.addr %s285, 8
          %s287 = scalar_lea.vmem [#allocation7], %s286
          %s289 = ssub.s32 128, 128
          %290 = vsyncadd %s284, %s289
          %s291 = smul.addr %s29, 2
          %s292 = smul.addr %s291, 64
          %s293 = scalar_lea.hbm %s1, %s292
          %s294 = sshll.u32 %s287, 4
          %s295 = int_to_ptr.vmem [resolvable:$true] %s294
          %300 = dma.hbm_to_vmem [thread:$0]  %s293, 128, %s295, %s284, 64, 64, 4
        $region40: #{tpu_custom_call.1} parent=31 // pred_fallthru
          _
      $region32: #{tpu_custom_call.1} parent=5 // pred_fallthru
        _
      %p301 = scmp.le.s32.totalorder 1, %s22
      %p302 = scmp.lt.s32.totalorder %s22, 3
      %p303 = pnand %p301, %p302
      %p304 = pneg %p303
      // Predicated region
      $region41: #{tpu_custom_call.1} parent=5 // pred_check
        _
      $region42: #{tpu_custom_call.1} parent=5 // pred_check_branch
        %306 = sbr.rel (%p303) target = $region44
      $region43: #{tpu_custom_call.1} parent=5 // pred_region
        %s307 = ssub.s32 %s22, 1
        %s308 = sand.u32 %s49, 1
        %s309 = scalar_lea.sflag [#allocation5], %s308
        %s310 = sand.u32 %s49, 1
        %s311 = smul.addr %s310, 4
        %s312 = scalar_lea.vmem [#allocation4], %s311
        // Predicated region
        $region45: #{tpu_custom_call.1} parent=43 // pred_check
          %p313 = pneg %p62
        $region46: #{tpu_custom_call.1} parent=43 // pred_check_branch
          %315 = sbr.rel (%p313) target = $region48
        $region47: #{tpu_custom_call.1} parent=43 // pred_region
          %316 = dma.done %s309, 64
        $region48: #{tpu_custom_call.1} parent=43 // pred_fallthru
          _
        %s317 = sand.u32 %s27, 1
        %s318 = scalar_lea.sflag [#allocation8], %s317
        %s319 = sand.u32 %s75, 1
        %s320 = smul.addr %s319, 8
        %s321 = scalar_lea.vmem [#allocation7], %s320
        // Predicated region
        $region49: #{tpu_custom_call.1} parent=43 // pred_check
          %p322 = pneg %p88
        $region50: #{tpu_custom_call.1} parent=43 // pred_check_branch
          %324 = sbr.rel (%p322) target = $region52
        $region51: #{tpu_custom_call.1} parent=43 // pred_region
          %325 = dma.done %s318, 128
        $region52: #{tpu_custom_call.1} parent=43 // pred_fallthru
          _
        // Predicated region
        $region53: #{tpu_custom_call.1} parent=43 // pred_check
          %p326 = pneg %p109
        $region54: #{tpu_custom_call.1} parent=43 // pred_check_branch
          %328 = sbr.rel (%p326) target = $region56
        $region55: #{tpu_custom_call.1} parent=43 // pred_region
          %329 = dma.done [#allocation8], 256
        $region56: #{tpu_custom_call.1} parent=43 // pred_fallthru
          _
        // Predicated region
        $region57: #{tpu_custom_call.1} parent=43 // pred_check
          %p330 = pneg %p130
        $region58: #{tpu_custom_call.1} parent=43 // pred_check_branch
          %332 = sbr.rel (%p330) target = $region60
        $region59: #{tpu_custom_call.1} parent=43 // pred_region
          %333 = dma.done [#allocation11], 256
        $region60: #{tpu_custom_call.1} parent=43 // pred_fallthru
          _
        // Predicated region
        $region61: #{tpu_custom_call.1} parent=43 // pred_check
          %p334 = pneg %p151
        $region62: #{tpu_custom_call.1} parent=43 // pred_check_branch
          %336 = sbr.rel (%p334) target = $region64
        $region63: #{tpu_custom_call.1} parent=43 // pred_region
          %337 = dma.done [#allocation11], 256
        $region64: #{tpu_custom_call.1} parent=43 // pred_fallthru
          _
        %s338 = sand.u32 %s49, 1
        %s339 = scalar_lea.sflag [#allocation5], %s338
        %s340 = sand.u32 %s49, 1
        %s341 = smul.addr %s340, 4
        %s342 = scalar_lea.vmem [#allocation4], %s341
        %p343 = pneg %p62
        %p344 = pneg %p59
        %s345 = sand.u32 %s27, 1
        %s346 = scalar_lea.sflag [#allocation8], %s345
        %s347 = sand.u32 %s75, 1
        %s348 = smul.addr %s347, 8
        %s349 = scalar_lea.vmem [#allocation7], %s348
        %p350 = pneg %p88
        %p351 = pneg %p85
        %p352 = pneg %p109
        %p353 = pneg %p106
        %p354 = pneg %p130
        %p355 = pneg %p127
        %p356 = pneg %p151
        %p357 = pneg %p148
        %p358 = pneg %p172
        %p359 = pneg %p169
        %p360 = pneg %p200
        %p361 = pneg %p197
        %s362 = sand.u32 %s187, 1
        %s363 = scalar_lea.sflag [#allocation6], %s362
        %s364 = sand.u32 %s187, 1
        %s365 = smul.addr %s364, 8
        %s366 = scalar_lea.vmem [#allocation13], %s365
        %p368 = scmp.eq.s32.totalorder %s32, 0
        // Predicated region
        $region65: #{tpu_custom_call.1} parent=43 // pred_check
          %p369 = pneg %p368
        $region66: #{tpu_custom_call.1} parent=43 // pred_check_branch
          %371 = sbr.rel (%p369) target = $region68
        $region67: #{tpu_custom_call.1} parent=43 // pred_region
          %v372 = vld [vmem:[%s321] sm:$0xf]
          %v373 = vld [vmem:[%s321 + $0x4] sm:$0xf]
          %v374 = vld [vmem:[#allocation10] sm:$0xf]
          %v375 = vld [vmem:[#allocation10 + $0x4] sm:$0xf]
          %v376 = vld [vmem:[#allocation10 + $0x8] sm:$0xf]
          %v377 = vld [vmem:[#allocation10 + $0xc] sm:$0xf]
          %v380 = vunpack.c.l.b16 %v372
          %v381 = vunpack.c.l.b16 %v373
          %v382 = vpack.c.b16 %v381, %v380
          %v387 = vunpack.c.l.b16 %v374
          %v388 = vunpack.c.l.b16 %v375
          %v389 = vunpack.c.l.b16 %v376
          %v390 = vunpack.c.l.b16 %v377
          %v391 = vpack.c.b16 %v388, %v387
          %v392 = vpack.c.b16 %v390, %v389
          %vm395 = vcmask 261120
          %v397 = vsel %vm395, %v382, 0
          %399 = vmatprep.subr.bf16.mxu0 0
          %400 = vmatpush1.bf16.msra.mxu0 %v391
          %401 = vmatprep.subr.bf16.mxu0 0
          %402 = vmatpush1.bf16.msra.mxu0 %v392
          %403 = vmatprep.subr.bf16.mxu0 0
          %404 = vmatpush1.bf16.msra.mxu0 0
          %405 = vmatprep.subr.bf16.mxu0 0
          %406 = vmatpush1.bf16.msra.mxu0 0
          %407 = vmatprep.subr.bf16.mxu0 0
          %408 = vmatpush1.bf16.msra.mxu0 0
          %409 = vmatprep.subr.bf16.mxu0 0
          %410 = vmatpush1.bf16.msra.mxu0 0
          %411 = vmatprep.subr.bf16.mxu0 0
          %412 = vmatpush1.bf16.msra.mxu0 0
          %413 = vmatprep.subr.bf16.mxu0 0
          %414 = vmatpush1.bf16.msra.mxu0 0
          %415 = vmatprep.subr.bf16.mxu0 0
          %416 = vmatpush1.bf16.msra.mxu0 0
          %417 = vmatprep.subr.bf16.mxu0 0
          %418 = vmatpush1.bf16.msra.mxu0 0
          %419 = vmatprep.subr.bf16.mxu0 0
          %420 = vmatpush1.bf16.msra.mxu0 0
          %421 = vmatprep.subr.bf16.mxu0 0
          %422 = vmatpush1.bf16.msra.mxu0 0
          %423 = vmatprep.subr.bf16.mxu0 0
          %424 = vmatpush1.bf16.msra.mxu0 0
          %425 = vmatprep.subr.bf16.mxu0 0
          %426 = vmatpush1.bf16.msra.mxu0 0
          %427 = vmatprep.subr.bf16.mxu0 0
          %428 = vmatpush1.bf16.msra.mxu0 0
          %429 = vmatprep.subr.bf16.mxu0 0
          %430 = vmatpush1.bf16.msra.mxu0 0
          %431 = vmatprep.mubr.bf16.mxu0 0
          %432 = vmatmul.mubr.bf16.gmra.mrb[0].mxu0 %v397
          %v433 = vpop.f32.mrb[0].mxu0
          %v434 = vadd.f32 0.0, %v433
          %v435 = vpop.f32.mrb[0].mxu0
          %v436 = vpop.f32.mrb[0].mxu0
          %v437 = vadd.f32 0.0, %v436
          %v438 = vpop.f32.mrb[0].mxu0
          %439 = vdwg.mxu0
          %v440 = vpack.c.bf16 %v437, %v434
          %441 = vst.msk [vmem:[#allocation2] sm:$0xff] %vm395, %v440
          %v442 = vld [vmem:[#allocation12] sm:$0xf]
          %v443 = vld [vmem:[#allocation12 + $0x4] sm:$0xf]
          %v444 = vld [vmem:[#allocation12 + $0x8] sm:$0xf]
          %v445 = vld [vmem:[#allocation12 + $0xc] sm:$0xf]
          %v450 = vunpack.c.l.b16 %v442
          %v451 = vunpack.c.l.b16 %v443
          %v452 = vunpack.c.l.b16 %v444
          %v453 = vunpack.c.l.b16 %v445
          %v454 = vpack.c.b16 %v451, %v450
          %v455 = vpack.c.b16 %v453, %v452
          %458 = vmatprep.subr.bf16.mxu0 0
          %459 = vmatpush1.bf16.msra.mxu0 %v454
          %460 = vmatprep.subr.bf16.mxu0 0
          %461 = vmatpush1.bf16.msra.mxu0 %v455
          %462 = vmatprep.subr.bf16.mxu0 0
          %463 = vmatpush1.bf16.msra.mxu0 0
          %464 = vmatprep.subr.bf16.mxu0 0
          %465 = vmatpush1.bf16.msra.mxu0 0
          %466 = vmatprep.subr.bf16.mxu0 0
          %467 = vmatpush1.bf16.msra.mxu0 0
          %468 = vmatprep.subr.bf16.mxu0 0
          %469 = vmatpush1.bf16.msra.mxu0 0
          %470 = vmatprep.subr.bf16.mxu0 0
          %471 = vmatpush1.bf16.msra.mxu0 0
          %472 = vmatprep.subr.bf16.mxu0 0
          %473 = vmatpush1.bf16.msra.mxu0 0
          %474 = vmatprep.subr.bf16.mxu0 0
          %475 = vmatpush1.bf16.msra.mxu0 0
          %476 = vmatprep.subr.bf16.mxu0 0
          %477 = vmatpush1.bf16.msra.mxu0 0
          %478 = vmatprep.subr.bf16.mxu0 0
          %479 = vmatpush1.bf16.msra.mxu0 0
          %480 = vmatprep.subr.bf16.mxu0 0
          %481 = vmatpush1.bf16.msra.mxu0 0
          %482 = vmatprep.subr.bf16.mxu0 0
          %483 = vmatpush1.bf16.msra.mxu0 0
          %484 = vmatprep.subr.bf16.mxu0 0
          %485 = vmatpush1.bf16.msra.mxu0 0
          %486 = vmatprep.subr.bf16.mxu0 0
          %487 = vmatpush1.bf16.msra.mxu0 0
          %488 = vmatprep.subr.bf16.mxu0 0
          %489 = vmatpush1.bf16.msra.mxu0 0
          %490 = vmatprep.mubr.bf16.mxu0 0
          %491 = vmatmul.mubr.bf16.gmra.mrb[0].mxu0 %v397
          %v492 = vpop.f32.mrb[0].mxu0
          %v493 = vadd.f32 0.0, %v492
          %v494 = vpop.f32.mrb[0].mxu0
          %v495 = vpop.f32.mrb[0].mxu0
          %v496 = vadd.f32 0.0, %v495
          %v497 = vpop.f32.mrb[0].mxu0
          %498 = vdwg.mxu0
          %v499 = vpack.c.bf16 %v496, %v493
          %500 = vst.msk [vmem:[#allocation3] sm:$0xff] %vm395, %v499
        $region68: #{tpu_custom_call.1} parent=43 // pred_fallthru
          _
        %v501 = vld [vmem:[%s312] sm:$0xf]
        %v502 = vld [vmem:[#allocation9] sm:$0xf]
        %v503 = vld [vmem:[#allocation9 + $0x4] sm:$0xf]
        %v504 = vld [vmem:[#allocation9 + $0x8] sm:$0xf]
        %v505 = vld [vmem:[#allocation9 + $0xc] sm:$0xf]
        %v510 = vunpack.c.l.b16 %v502
        %v511 = vunpack.c.l.b16 %v503
        %v512 = vunpack.c.l.b16 %v504
        %v513 = vunpack.c.l.b16 %v505
        %v514 = vpack.c.b16 %v511, %v510
        %v515 = vpack.c.b16 %v513, %v512
        %vm518 = vcmask 261120
        %v520 = vsel %vm518, %v501, 0
        %522 = vmatprep.subr.bf16.mxu0 0
        %523 = vmatpush1.bf16.msra.mxu0 %v514
        %524 = vmatprep.subr.bf16.mxu0 0
        %525 = vmatpush1.bf16.msra.mxu0 %v515
        %526 = vmatprep.subr.bf16.mxu0 0
        %527 = vmatpush1.bf16.msra.mxu0 0
        %528 = vmatprep.subr.bf16.mxu0 0
        %529 = vmatpush1.bf16.msra.mxu0 0
        %530 = vmatprep.subr.bf16.mxu0 0
        %531 = vmatpush1.bf16.msra.mxu0 0
        %532 = vmatprep.subr.bf16.mxu0 0
        %533 = vmatpush1.bf16.msra.mxu0 0
        %534 = vmatprep.subr.bf16.mxu0 0
        %535 = vmatpush1.bf16.msra.mxu0 0
        %536 = vmatprep.subr.bf16.mxu0 0
        %537 = vmatpush1.bf16.msra.mxu0 0
        %538 = vmatprep.subr.bf16.mxu0 0
        %539 = vmatpush1.bf16.msra.mxu0 0
        %540 = vmatprep.subr.bf16.mxu0 0
        %541 = vmatpush1.bf16.msra.mxu0 0
        %542 = vmatprep.subr.bf16.mxu0 0
        %543 = vmatpush1.bf16.msra.mxu0 0
        %544 = vmatprep.subr.bf16.mxu0 0
        %545 = vmatpush1.bf16.msra.mxu0 0
        %546 = vmatprep.subr.bf16.mxu0 0
        %547 = vmatpush1.bf16.msra.mxu0 0
        %548 = vmatprep.subr.bf16.mxu0 0
        %549 = vmatpush1.bf16.msra.mxu0 0
        %550 = vmatprep.subr.bf16.mxu0 0
        %551 = vmatpush1.bf16.msra.mxu0 0
        %552 = vmatprep.subr.bf16.mxu0 0
        %553 = vmatpush1.bf16.msra.mxu0 0
        %554 = vmatprep.mubr.bf16.mxu0 0
        %555 = vmatmul.mubr.bf16.gmra.mrb[0].mxu0 %v520
        %v556 = vpop.f32.mrb[0].mxu0
        %v557 = vadd.f32 0.0, %v556
        %v558 = vpop.f32.mrb[0].mxu0
        %v559 = vpop.f32.mrb[0].mxu0
        %v560 = vpop.f32.mrb[0].mxu0
        %561 = vdwg.mxu0
        %v562 = vpack.c.bf16 %v557, %v557
        %v563 = vld [vmem:[#allocation2] sm:$0xff]
        %v564 = vld [vmem:[#allocation3] sm:$0xff]
        %vm565 = vcmask 130048
        %v567 = vsel %vm565, %v562, 0
        %v570 = vsel %vm565, %v563, 0
        %572 = vmatprep.subr.bf16.mxu0 0
        %573 = vmatpush1.bf16.xpose.msra.mxu0 %v570
        %574 = vmatprep.subr.bf16.mxu0 0
        %575 = vmatpush1.bf16.xpose.msra.mxu0 0
        %576 = vmatprep.subr.bf16.mxu0 0
        %577 = vmatpush1.bf16.xpose.msra.mxu0 0
        %578 = vmatprep.subr.bf16.mxu0 0
        %579 = vmatpush1.bf16.xpose.msra.mxu0 0
        %580 = vmatprep.subr.bf16.mxu0 0
        %581 = vmatpush1.bf16.xpose.msra.mxu0 0
        %582 = vmatprep.subr.bf16.mxu0 0
        %583 = vmatpush1.bf16.xpose.msra.mxu0 0
        %584 = vmatprep.subr.bf16.mxu0 0
        %585 = vmatpush1.bf16.xpose.msra.mxu0 0
        %586 = vmatprep.subr.bf16.mxu0 0
        %587 = vmatpush1.bf16.xpose.msra.mxu0 0
        %588 = vmatprep.subr.bf16.mxu0 0
        %589 = vmatpush1.bf16.xpose.msra.mxu0 0
        %590 = vmatprep.subr.bf16.mxu0 0
        %591 = vmatpush1.bf16.xpose.msra.mxu0 0
        %592 = vmatprep.subr.bf16.mxu0 0
        %593 = vmatpush1.bf16.xpose.msra.mxu0 0
        %594 = vmatprep.subr.bf16.mxu0 0
        %595 = vmatpush1.bf16.xpose.msra.mxu0 0
        %596 = vmatprep.subr.bf16.mxu0 0
        %597 = vmatpush1.bf16.xpose.msra.mxu0 0
        %598 = vmatprep.subr.bf16.mxu0 0
        %599 = vmatpush1.bf16.xpose.msra.mxu0 0
        %600 = vmatprep.subr.bf16.mxu0 0
        %601 = vmatpush1.bf16.xpose.msra.mxu0 0
        %602 = vmatprep.subr.bf16.mxu0 0
        %603 = vmatpush1.bf16.xpose.msra.mxu0 0
        %604 = vmatprep.mubr.bf16.mxu0 0
        %605 = vmatmul.mubr.bf16.gmra.mrb[0].mxu0 %v567
        %v606 = vpop.f32.mrb[0].mxu0
        %v607 = vadd.f32 0.0, %v606
        %v608 = vpop.f32.mrb[0].mxu0
        %v609 = vpop.f32.mrb[0].mxu0
        %v610 = vpop.f32.mrb[0].mxu0
        %611 = vdwg.mxu0
        %v612 = vsel %vm565, %v607, -inf
        %613 = vmax.xlane.f32.xlu0 %v612
        %v614 = vpop.xlane.xlu0 %613
        %v615 = vsub.f32 %v607, %v614
        %v616 = vmul.f32 %v615, 1.442695
        %v617 = vpow.pop %v616
        %v618 = vsel %vm565, %v617, 0.0
        %619 = vadd.xlane.f32.xlu0 %v618
        %v620 = vpop.xlane.xlu0 %619
        %v621 = vrcp.pop %v620
        %v622 = vmul.f32 %v617, %v621
        %v623 = vpack.c.bf16 %v622, %v622
        %v625 = vsel %vm565, %v623, 0
        %627 = vmatprep.subr.bf16.mxu0 0
        %628 = vmatpush1.bf16.msra.mxu0 %v564
        %629 = vmatprep.subr.bf16.mxu0 0
        %630 = vmatpush1.bf16.msra.mxu0 0
        %631 = vmatprep.subr.bf16.mxu0 0
        %632 = vmatpush1.bf16.msra.mxu0 0
        %633 = vmatprep.subr.bf16.mxu0 0
        %634 = vmatpush1.bf16.msra.mxu0 0
        %635 = vmatprep.subr.bf16.mxu0 0
        %636 = vmatpush1.bf16.msra.mxu0 0
        %637 = vmatprep.subr.bf16.mxu0 0
        %638 = vmatpush1.bf16.msra.mxu0 0
        %639 = vmatprep.subr.bf16.mxu0 0
        %640 = vmatpush1.bf16.msra.mxu0 0
        %641 = vmatprep.subr.bf16.mxu0 0
        %642 = vmatpush1.bf16.msra.mxu0 0
        %643 = vmatprep.subr.bf16.mxu0 0
        %644 = vmatpush1.bf16.msra.mxu0 0
        %645 = vmatprep.subr.bf16.mxu0 0
        %646 = vmatpush1.bf16.msra.mxu0 0
        %647 = vmatprep.subr.bf16.mxu0 0
        %648 = vmatpush1.bf16.msra.mxu0 0
        %649 = vmatprep.subr.bf16.mxu0 0
        %650 = vmatpush1.bf16.msra.mxu0 0
        %651 = vmatprep.subr.bf16.mxu0 0
        %652 = vmatpush1.bf16.msra.mxu0 0
        %653 = vmatprep.subr.bf16.mxu0 0
        %654 = vmatpush1.bf16.msra.mxu0 0
        %655 = vmatprep.subr.bf16.mxu0 0
        %656 = vmatpush1.bf16.msra.mxu0 0
        %657 = vmatprep.subr.bf16.mxu0 0
        %658 = vmatpush1.bf16.msra.mxu0 0
        %659 = vmatprep.mubr.bf16.mxu0 0
        %660 = vmatmul.mubr.bf16.gmra.mrb[0].mxu0 %v625
        %v661 = vpop.f32.mrb[0].mxu0
        %v662 = vadd.f32 0.0, %v661
        %v663 = vpop.f32.mrb[0].mxu0
        %v664 = vpop.f32.mrb[0].mxu0
        %v665 = vpop.f32.mrb[0].mxu0
        %666 = vdwg.mxu0
        %v667 = vpack.c.bf16 %v662, %v662
        %v668 = vld [vmem:[%s5] sm:$0xf]
        %v669 = vld [vmem:[%s5 + $0x4] sm:$0xf]
        %671 = vrot.lane.b32.xlu0 %v562, 112
        %v672 = vpop.permute.xlu0 %671
        %674 = vrot.lane.b32.xlu0 %v563, 112
        %v675 = vpop.permute.xlu0 %674
        %v677 = vsel %vm565, %v672, 0
        %v680 = vsel %vm565, %v675, 0
        %682 = vmatprep.subr.bf16.mxu0 0
        %683 = vmatpush1.bf16.xpose.msra.mxu0 %v680
        %684 = vmatprep.subr.bf16.mxu0 0
        %685 = vmatpush1.bf16.xpose.msra.mxu0 0
        %686 = vmatprep.subr.bf16.mxu0 0
        %687 = vmatpush1.bf16.xpose.msra.mxu0 0
        %688 = vmatprep.subr.bf16.mxu0 0
        %689 = vmatpush1.bf16.xpose.msra.mxu0 0
        %690 = vmatprep.subr.bf16.mxu0 0
        %691 = vmatpush1.bf16.xpose.msra.mxu0 0
        %692 = vmatprep.subr.bf16.mxu0 0
        %693 = vmatpush1.bf16.xpose.msra.mxu0 0
        %694 = vmatprep.subr.bf16.mxu0 0
        %695 = vmatpush1.bf16.xpose.msra.mxu0 0
        %696 = vmatprep.subr.bf16.mxu0 0
        %697 = vmatpush1.bf16.xpose.msra.mxu0 0
        %698 = vmatprep.subr.bf16.mxu0 0
        %699 = vmatpush1.bf16.xpose.msra.mxu0 0
        %700 = vmatprep.subr.bf16.mxu0 0
        %701 = vmatpush1.bf16.xpose.msra.mxu0 0
        %702 = vmatprep.subr.bf16.mxu0 0
        %703 = vmatpush1.bf16.xpose.msra.mxu0 0
        %704 = vmatprep.subr.bf16.mxu0 0
        %705 = vmatpush1.bf16.xpose.msra.mxu0 0
        %706 = vmatprep.subr.bf16.mxu0 0
        %707 = vmatpush1.bf16.xpose.msra.mxu0 0
        %708 = vmatprep.subr.bf16.mxu0 0
        %709 = vmatpush1.bf16.xpose.msra.mxu0 0
        %710 = vmatprep.subr.bf16.mxu0 0
        %711 = vmatpush1.bf16.xpose.msra.mxu0 0
        %712 = vmatprep.subr.bf16.mxu0 0
        %713 = vmatpush1.bf16.xpose.msra.mxu0 0
        %714 = vmatprep.mubr.bf16.mxu0 0
        %715 = vmatmul.mubr.bf16.gmra.mrb[0].mxu0 %v677
        %v716 = vpop.f32.mrb[0].mxu0
        %v717 = vadd.f32 0.0, %v716
        %v718 = vpop.f32.mrb[0].mxu0
        %v719 = vpop.f32.mrb[0].mxu0
        %v720 = vpop.f32.mrb[0].mxu0
        %721 = vdwg.mxu0
        %v722 = vsel %vm565, %v717, -inf
        %723 = vmax.xlane.f32.xlu0 %v722
        %v724 = vpop.xlane.xlu0 %723
        %v725 = vsub.f32 %v717, %v724
        %v726 = vmul.f32 %v725, 1.442695
        %v727 = vpow.pop %v726
        %v728 = vsel %vm565, %v727, 0.0
        %729 = vadd.xlane.f32.xlu0 %v728
        %v730 = vpop.xlane.xlu0 %729
        %v731 = vrcp.pop %v730
        %v732 = vmul.f32 %v727, %v731
        %v733 = vpack.c.bf16 %v732, %v732
        %735 = vrot.lane.b32.xlu0 %v564, 112
        %v736 = vpop.permute.xlu0 %735
        %v739 = vsel %vm565, %v733, 0
        %741 = vmatprep.subr.bf16.mxu0 0
        %742 = vmatpush1.bf16.msra.mxu0 %v736
        %743 = vmatprep.subr.bf16.mxu0 0
        %744 = vmatpush1.bf16.msra.mxu0 0
        %745 = vmatprep.subr.bf16.mxu0 0
        %746 = vmatpush1.bf16.msra.mxu0 0
        %747 = vmatprep.subr.bf16.mxu0 0
        %748 = vmatpush1.bf16.msra.mxu0 0
        %749 = vmatprep.subr.bf16.mxu0 0
        %750 = vmatpush1.bf16.msra.mxu0 0
        %751 = vmatprep.subr.bf16.mxu0 0
        %752 = vmatpush1.bf16.msra.mxu0 0
        %753 = vmatprep.subr.bf16.mxu0 0
        %754 = vmatpush1.bf16.msra.mxu0 0
        %755 = vmatprep.subr.bf16.mxu0 0
        %756 = vmatpush1.bf16.msra.mxu0 0
        %757 = vmatprep.subr.bf16.mxu0 0
        %758 = vmatpush1.bf16.msra.mxu0 0
        %759 = vmatprep.subr.bf16.mxu0 0
        %760 = vmatpush1.bf16.msra.mxu0 0
        %761 = vmatprep.subr.bf16.mxu0 0
        %762 = vmatpush1.bf16.msra.mxu0 0
        %763 = vmatprep.subr.bf16.mxu0 0
        %764 = vmatpush1.bf16.msra.mxu0 0
        %765 = vmatprep.subr.bf16.mxu0 0
        %766 = vmatpush1.bf16.msra.mxu0 0
        %767 = vmatprep.subr.bf16.mxu0 0
        %768 = vmatpush1.bf16.msra.mxu0 0
        %769 = vmatprep.subr.bf16.mxu0 0
        %770 = vmatpush1.bf16.msra.mxu0 0
        %771 = vmatprep.subr.bf16.mxu0 0
        %772 = vmatpush1.bf16.msra.mxu0 0
        %773 = vmatprep.mubr.bf16.mxu0 0
        %774 = vmatmul.mubr.bf16.gmra.mrb[0].mxu0 %v739
        %v775 = vpop.f32.mrb[0].mxu0
        %v776 = vadd.f32 0.0, %v775
        %v777 = vpop.f32.mrb[0].mxu0
        %v778 = vpop.f32.mrb[0].mxu0
        %v779 = vpop.f32.mrb[0].mxu0
        %780 = vdwg.mxu0
        %v781 = vpack.c.bf16 %v776, %v776
        %v782 = vld [vmem:[%s5 + $0x8] sm:$0xf]
        %v783 = vld [vmem:[%s5 + $0xc] sm:$0xf]
        %v786 = vunpack.c.l.b16 %v782
        %v787 = vunpack.c.l.b16 %v783
        %v788 = vpack.c.b16 %v787, %v786
        %v791 = vsel %vm565, %v781, 0
        %793 = vmatprep.subr.bf16.mxu0 0
        %794 = vmatpush1.bf16.msra.mxu0 %v788
        %795 = vmatprep.subr.bf16.mxu0 0
        %796 = vmatpush1.bf16.msra.mxu0 0
        %797 = vmatprep.subr.bf16.mxu0 0
        %798 = vmatpush1.bf16.msra.mxu0 0
        %799 = vmatprep.subr.bf16.mxu0 0
        %800 = vmatpush1.bf16.msra.mxu0 0
        %801 = vmatprep.subr.bf16.mxu0 0
        %802 = vmatpush1.bf16.msra.mxu0 0
        %803 = vmatprep.subr.bf16.mxu0 0
        %804 = vmatpush1.bf16.msra.mxu0 0
        %805 = vmatprep.subr.bf16.mxu0 0
        %806 = vmatpush1.bf16.msra.mxu0 0
        %807 = vmatprep.subr.bf16.mxu0 0
        %808 = vmatpush1.bf16.msra.mxu0 0
        %809 = vmatprep.subr.bf16.mxu0 0
        %810 = vmatpush1.bf16.msra.mxu0 0
        %811 = vmatprep.subr.bf16.mxu0 0
        %812 = vmatpush1.bf16.msra.mxu0 0
        %813 = vmatprep.subr.bf16.mxu0 0
        %814 = vmatpush1.bf16.msra.mxu0 0
        %815 = vmatprep.subr.bf16.mxu0 0
        %816 = vmatpush1.bf16.msra.mxu0 0
        %817 = vmatprep.subr.bf16.mxu0 0
        %818 = vmatpush1.bf16.msra.mxu0 0
        %819 = vmatprep.subr.bf16.mxu0 0
        %820 = vmatpush1.bf16.msra.mxu0 0
        %821 = vmatprep.subr.bf16.mxu0 0
        %822 = vmatpush1.bf16.msra.mxu0 0
        %823 = vmatprep.subr.bf16.mxu0 0
        %824 = vmatpush1.bf16.msra.mxu0 0
        %825 = vmatprep.mubr.bf16.mxu0 0
        %826 = vmatmul.mubr.bf16.gmra.mrb[0].mxu0 %v791
        %v827 = vpop.f32.mrb[0].mxu0
        %v828 = vadd.f32 0.0, %v827
        %v829 = vpop.f32.mrb[0].mxu0
        %v830 = vpop.f32.mrb[0].mxu0
        %v831 = vpop.f32.mrb[0].mxu0
        %832 = vdwg.mxu0
        %v835 = vunpack.c.l.b16 %v668
        %v836 = vunpack.c.l.b16 %v669
        %v837 = vpack.c.b16 %v836, %v835
        %v840 = vsel %vm565, %v667, 0
        %842 = vmatprep.subr.bf16.mxu0 0
        %843 = vmatpush1.bf16.msra.mxu0 %v837
        %844 = vmatprep.subr.bf16.mxu0 0
        %845 = vmatpush1.bf16.msra.mxu0 0
        %846 = vmatprep.subr.bf16.mxu0 0
        %847 = vmatpush1.bf16.msra.mxu0 0
        %848 = vmatprep.subr.bf16.mxu0 0
        %849 = vmatpush1.bf16.msra.mxu0 0
        %850 = vmatprep.subr.bf16.mxu0 0
        %851 = vmatpush1.bf16.msra.mxu0 0
        %852 = vmatprep.subr.bf16.mxu0 0
        %853 = vmatpush1.bf16.msra.mxu0 0
        %854 = vmatprep.subr.bf16.mxu0 0
        %855 = vmatpush1.bf16.msra.mxu0 0
        %856 = vmatprep.subr.bf16.mxu0 0
        %857 = vmatpush1.bf16.msra.mxu0 0
        %858 = vmatprep.subr.bf16.mxu0 0
        %859 = vmatpush1.bf16.msra.mxu0 0
        %860 = vmatprep.subr.bf16.mxu0 0
        %861 = vmatpush1.bf16.msra.mxu0 0
        %862 = vmatprep.subr.bf16.mxu0 0
        %863 = vmatpush1.bf16.msra.mxu0 0
        %864 = vmatprep.subr.bf16.mxu0 0
        %865 = vmatpush1.bf16.msra.mxu0 0
        %866 = vmatprep.subr.bf16.mxu0 0
        %867 = vmatpush1.bf16.msra.mxu0 0
        %868 = vmatprep.subr.bf16.mxu0 0
        %869 = vmatpush1.bf16.msra.mxu0 0
        %870 = vmatprep.subr.bf16.mxu0 0
        %871 = vmatpush1.bf16.msra.mxu0 0
        %872 = vmatprep.subr.bf16.mxu0 0
        %873 = vmatpush1.bf16.msra.mxu0 0
        %874 = vmatprep.mubr.bf16.mxu0 0
        %875 = vmatmul.mubr.bf16.gmra.mrb[0].mxu0 %v840
        %v876 = vpop.f32.mrb[0].mxu0
        %v877 = vadd.f32 %v828, %v876
        %v878 = vpop.f32.mrb[0].mxu0
        %v879 = vpop.f32.mrb[0].mxu0
        %v880 = vpop.f32.mrb[0].mxu0
        %881 = vdwg.mxu0
        %882 = vst.msk [vmem:[%s366] sm:$0xff] %vm518, %v877
        %s883 = sand.u32 %s187, 1
        %s884 = scalar_lea.sflag [#allocation6], %s883
        %s885 = sand.u32 %s187, 1
        %s886 = smul.addr %s885, 8
        %s887 = scalar_lea.vmem [#allocation13], %s886
        // Predicated region
        $region69: #{tpu_custom_call.1} parent=43 // pred_check
          %p888 = pneg %p197
        $region70: #{tpu_custom_call.1} parent=43 // pred_check_branch
          %890 = sbr.rel (%p888) target = $region72
        $region71: #{tpu_custom_call.1} parent=43 // pred_region
          %s892 = ssub.s32 128, 128
          %893 = vsyncadd %s884, %s892
          %s894 = sadd.s32 %s32, %s31
          %s895 = smul.addr %s894, 128
          %s896 = scalar_lea.hbm %s6, %s895
          %s898 = sshll.u32 %s887, 4
          %s899 = int_to_ptr.vmem [resolvable:$true] %s898
          %901 = dma.vmem_to_hbm [thread:$0]  %s899, 128, %s896, %s884
        $region72: #{tpu_custom_call.1} parent=43 // pred_fallthru
          _
      $region44: #{tpu_custom_call.1} parent=5 // pred_fallthru
        _
      %p902 = scmp.le.s32.totalorder 2, %s22
      // Predicated region
      $region73: #{tpu_custom_call.1} parent=5 // pred_check
        %p903 = pneg %p902
      $region74: #{tpu_custom_call.1} parent=5 // pred_check_branch
        %905 = sbr.rel (%p903) target = $region76
      $region75: #{tpu_custom_call.1} parent=5 // pred_region
        %s906 = ssub.s32 %s22, 2
        // Predicated region
        $region77: #{tpu_custom_call.1} parent=75 // pred_check
          %p907 = pneg %p203
        $region78: #{tpu_custom_call.1} parent=75 // pred_check_branch
          %909 = sbr.rel (%p907) target = $region80
        $region79: #{tpu_custom_call.1} parent=75 // pred_region
          %s910 = sand.u32 %s188, 1
          %s911 = scalar_lea.sflag [#allocation6], %s910
          %s912 = sand.u32 %s188, 1
          %s913 = smul.addr %s912, 8
          %s914 = scalar_lea.vmem [#allocation13], %s913
          %915 = dma.done %s911, 128
        $region80: #{tpu_custom_call.1} parent=75 // pred_fallthru
          _
      $region76: #{tpu_custom_call.1} parent=5 // pred_fallthru
        _
    $region6: #{tpu_custom_call.1} parent=1 // loop_footer
      %s26 = sadd.s32 1, %s22
    $region7: #{tpu_custom_call.1} parent=1 // loop_footer_branch
      %21 = sbr.rel target = $region3
    $region8: #{tpu_custom_call.1} parent=1 // loop_exit
      _
    %916 = vsyncpa [#allocation5], 1
    %s917 = scalar_lea.sflag [#allocation5], 1
    %918 = vsyncpa %s917, 1
    %919 = vsyncpa [#allocation8], 1
    %s920 = scalar_lea.sflag [#allocation8], 1
    %921 = vsyncpa %s920, 1
    %922 = vsyncpa [#allocation11], 1
    %923 = vsyncpa [#allocation6], 1
    %s924 = scalar_lea.sflag [#allocation6], 1
    %925 = vsyncpa %s924, 1

</llo_original>
